<compile_context>
chip_gen: v7x
topology: tpu7x:2x2x1
jax: 0.10.0
libtpu: 0.0.40
codegen_flags: <defaults>
</compile_context>

<pallas_src>
import jax
import jax.numpy as jnp
from jax.experimental import pallas as pl
from jax.experimental.pallas import tpu as pltpu

# ---- config (small, ViT-like) ----
B = 2            # batch
S = 8            # sequence length (tokens)
H = 32           # hidden size
NH = 4           # num heads
HD = H // NH     # head dim
I = 4 * H        # intermediate size
BS = B * S       # flattened token rows
EPS = 1e-6


def _layernorm(x, gamma, beta):
    mu = jnp.mean(x, axis=-1, keepdims=True)
    xc = x - mu
    var = jnp.mean(xc * xc, axis=-1, keepdims=True)
    return xc * jax.lax.rsqrt(var + EPS) * gamma + beta


def _quick_gelu(x):
    return x * jax.nn.sigmoid(1.702 * x)


def vit_layer_kernel(x_ref,
                     ln1_g_ref, ln1_b_ref,
                     wqkv_ref, bqkv_ref,
                     wc_ref, bc_ref,
                     ln2_g_ref, ln2_b_ref,
                     w1_ref, b1_ref, w2_ref, b2_ref,
                     o_ref):
    x = x_ref[...]                                   # (BS, H) f32

    # hoist broadcast rows once (single invocation, single read each)
    ln1_g, ln1_b = ln1_g_ref[0], ln1_b_ref[0]
    ln2_g, ln2_b = ln2_g_ref[0], ln2_b_ref[0]
    bqkv, bc = bqkv_ref[0], bc_ref[0]
    b1, b2 = b1_ref[0], b2_ref[0]

    # ---------------- attention block (ln_pre) ----------------
    xn = _layernorm(x, ln1_g, ln1_b)

    # Fused QKV projection: one (BS,H)x(H,3H) bf16 matmul, f32 accumulate.
    # 1/sqrt(HD) is already folded into the Q columns of wqkv / bqkv.
    qkv = jnp.dot(xn.astype(jnp.bfloat16), wqkv_ref[...],
                  preferred_element_type=jnp.float32) + bqkv    # (BS, 3H) f32

    # Per-(batch, head) attention on contiguous lane slices of qkv.
    # No head-split / merge transposes or relayouts are needed; k^T is
    # expressed via dot_general dimension numbers, never materialized.
    ctx_rows = []
    for b in range(B):
        r0 = b * S
        head_ctx = []
        for n in range(NH):
            c0 = n * HD
            qh = qkv[r0:r0 + S, c0:c0 + HD].astype(jnp.bfloat16)           # (S, HD)
            kh = qkv[r0:r0 + S, H + c0:H + c0 + HD].astype(jnp.bfloat16)    # (S, HD)
            vh = qkv[r0:r0 + S, 2 * H + c0:2 * H + c0 + HD].astype(jnp.bfloat16)

            # scores = (q / sqrt(HD)) @ k^T   (scale pre-folded into q)
            s = jax.lax.dot_general(qh, kh, (((1,), (1,)), ((), ())),
                                    preferred_element_type=jnp.float32)     # (S, S)

            # numerically stable softmax (f32); denom via EUP approx recip
            m = jnp.max(s, axis=-1, keepdims=True)
            e = jnp.exp(s - m)
            p = e * pl.reciprocal(jnp.sum(e, axis=-1, keepdims=True),
                                  approx=True)
            # attn_dropout == 0.0 -> identity

            head_ctx.append(jnp.dot(p.astype(jnp.bfloat16), vh,
                                    preferred_element_type=jnp.float32))    # (S, HD)
        ctx_rows.append(jnp.concatenate(head_ctx, axis=-1))                 # (S, H)
    ctx = jnp.concatenate(ctx_rows, axis=0)                                  # (BS, H)

    attn_out = jnp.dot(ctx.astype(jnp.bfloat16), wc_ref[...],
                       preferred_element_type=jnp.float32) + bc
    # out_dropout == 0.0 -> identity
    x1 = x + attn_out                                  # residual (f32)

    # ---------------- MLP block (ln_post, QuickGELU) ----------------
    # TODO(synk): K-tile these two matmuls over I with a reduction grid axis
    # and a VMEM f32 accumulator at real ViT dims (v7x VMEM budget).
    xn2 = _layernorm(x1, ln2_g, ln2_b)
    h = jnp.dot(xn2.astype(jnp.bfloat16), w1_ref[...],
                preferred_element_type=jnp.float32) + b1
    h = _quick_gelu(h)
    mlp_out = jnp.dot(h.astype(jnp.bfloat16), w2_ref[...],
                      preferred_element_type=jnp.float32) + b2

    o_ref[...] = x1 + mlp_out                          # residual (f32)


def _pack_params(p):
    """Fuse Wq|Wk|Wv into one (H, 3H) operand, fold 1/sqrt(HD) into the Q
    projection, and cast MXU weight operands to bf16 (biases / LN stay f32)."""
    inv_scale = 1.0 / (HD ** 0.5)
    wqkv = jnp.concatenate([p["wq"] * inv_scale, p["wk"], p["wv"]], axis=1)
    bqkv = jnp.concatenate([p["bq"] * inv_scale, p["bk"], p["bv"]], axis=1)
    return (p["ln1_g"], p["ln1_b"],
            wqkv.astype(jnp.bfloat16), bqkv,
            p["wc"].astype(jnp.bfloat16), p["bc"],
            p["ln2_g"], p["ln2_b"],
            p["w1"].astype(jnp.bfloat16), p["b1"],
            p["w2"].astype(jnp.bfloat16), p["b2"])


@jax.jit
def vit_layer(x, params):
    """x: (B, S, H) float32; params: dict of f32 master weights."""
    packed = _pack_params(params)
    x2d = x.reshape(BS, H)     # flatten (B, S) onto the sublane axis

    # Single invocation (no grid): every operand is whole-array resident in
    # VMEM (~25 KiB total), so there is no per-grid-step pipeline overhead.
    vmem = pl.BlockSpec(memory_space=pltpu.MemorySpace.VMEM)
    out2d = pl.pallas_call(
        vit_layer_kernel,
        out_shape=jax.ShapeDtypeStruct((BS, H), jnp.float32),
        in_specs=[vmem] * (1 + len(packed)),
        out_specs=vmem,
    )(x2d, *packed)
    return out2d.reshape(B, S, H)


# ---------------- pure-JAX f32 reference (semantics check) ----------------
def vit_layer_ref(x, p):
    def ln(t, g, b):
        mu = jnp.mean(t, axis=-1, keepdims=True)
        var = jnp.mean((t - mu) ** 2, axis=-1, keepdims=True)
        return (t - mu) / jnp.sqrt(var + EPS) * g + b

    xn = ln(x, p["ln1_g"][0], p["ln1_b"][0])
    q = xn @ p["wq"] + p["bq"][0]
    k = xn @ p["wk"] + p["bk"][0]
    v = xn @ p["wv"] + p["bv"][0]
    qh = q.reshape(B, S, NH, HD).transpose(0, 2, 1, 3)
    kh = k.reshape(B, S, NH, HD).transpose(0, 2, 1, 3)
    vh = v.reshape(B, S, NH, HD).transpose(0, 2, 1, 3)
    sc = jnp.einsum('bhqd,bhkd->bhqk', qh, kh) / (HD ** 0.5)
    pr = jax.nn.softmax(sc, axis=-1)
    ctx = jnp.einsum('bhqk,bhkd->bhqd', pr, vh).transpose(0, 2, 1, 3).reshape(B, S, H)
    x1 = x + ctx @ p["wc"] + p["bc"][0]
    xn2 = ln(x1, p["ln2_g"][0], p["ln2_b"][0])
    h = xn2 @ p["w1"] + p["b1"][0]
    h = h * jax.nn.sigmoid(1.702 * h)
    return x1 + h @ p["w2"] + p["b2"][0]


def make_params(key):
    ks = jax.random.split(key, 8)
    sd = 0.02
    return {
        "ln1_g": jnp.ones((1, H), jnp.float32),
        "ln1_b": jnp.zeros((1, H), jnp.float32),
        "wq": sd * jax.random.normal(ks[0], (H, H), jnp.float32),
        "bq": jnp.zeros((1, H), jnp.float32),
        "wk": sd * jax.random.normal(ks[1], (H, H), jnp.float32),
        "bk": jnp.zeros((1, H), jnp.float32),
        "wv": sd * jax.random.normal(ks[2], (H, H), jnp.float32),
        "bv": jnp.zeros((1, H), jnp.float32),
        "wc": sd * jax.random.normal(ks[3], (H, H), jnp.float32),
        "bc": jnp.zeros((1, H), jnp.float32),
        "ln2_g": jnp.ones((1, H), jnp.float32),
        "ln2_b": jnp.zeros((1, H), jnp.float32),
        "w1": sd * jax.random.normal(ks[4], (H, I), jnp.float32),
        "b1": jnp.zeros((1, I), jnp.float32),
        "w2": sd * jax.random.normal(ks[5], (I, H), jnp.float32),
        "b2": jnp.zeros((1, H), jnp.float32),
    }


if __name__ == "__main__":
    key = jax.random.PRNGKey(0)
    kx, kp = jax.random.split(key)
    x = jax.random.normal(kx, (B, S, H), jnp.float32)
    params = make_params(kp)

    out = jax.block_until_ready(vit_layer(x, params))
    ref = vit_layer_ref(x, params)

    assert out.shape == (B, S, H)
    # bf16 MXU operands + approx softmax reciprocal vs f32 reference:
    # observed error is ~1e-3; 1e-2 tolerance leaves ample margin.
    assert jnp.allclose(out, ref, atol=1e-2, rtol=1e-2), "mismatch vs reference"

    print("KERNEL_OK")
</pallas_src>

<mosaic_0001>
module attributes {stable_mosaic.version = 11 : i64} {
  func.func @vit_layer_kernel(%arg0: memref<16x32xf32, #tpu.memory_space<vmem>>, %arg1: memref<1x32xf32, #tpu.memory_space<vmem>>, %arg2: memref<1x32xf32, #tpu.memory_space<vmem>>, %arg3: memref<32x96xbf16, #tpu.memory_space<vmem>>, %arg4: memref<1x96xf32, #tpu.memory_space<vmem>>, %arg5: memref<32x32xbf16, #tpu.memory_space<vmem>>, %arg6: memref<1x32xf32, #tpu.memory_space<vmem>>, %arg7: memref<1x32xf32, #tpu.memory_space<vmem>>, %arg8: memref<1x32xf32, #tpu.memory_space<vmem>>, %arg9: memref<32x128xbf16, #tpu.memory_space<vmem>>, %arg10: memref<1x128xf32, #tpu.memory_space<vmem>>, %arg11: memref<128x32xbf16, #tpu.memory_space<vmem>>, %arg12: memref<1x32xf32, #tpu.memory_space<vmem>>, %arg13: memref<16x32xf32, #tpu.memory_space<vmem>>) attributes {dimension_semantics = [], scalar_prefetch = 0 : i64, scratch_operands = 0 : i64, tpu.core_type = #tpu.core_type<tc>} {
    %c0 = arith.constant 0 : index
    %c0_0 = arith.constant 0 : index
    %0 = vector.load %arg0[%c0, %c0_0] : memref<16x32xf32, #tpu.memory_space<vmem>>, vector<16x32xf32>
    %c0_1 = arith.constant 0 : index
    %c0_2 = arith.constant 0 : index
    %1 = vector.load %arg1[%c0_1, %c0_2] : memref<1x32xf32, #tpu.memory_space<vmem>>, vector<1x32xf32>
    %2 = vector.shape_cast %1 : vector<1x32xf32> to vector<32xf32>
    %c0_3 = arith.constant 0 : index
    %c0_4 = arith.constant 0 : index
    %3 = vector.load %arg2[%c0_3, %c0_4] : memref<1x32xf32, #tpu.memory_space<vmem>>, vector<1x32xf32>
    %4 = vector.shape_cast %3 : vector<1x32xf32> to vector<32xf32>
    %c0_5 = arith.constant 0 : index
    %c0_6 = arith.constant 0 : index
    %5 = vector.load %arg7[%c0_5, %c0_6] : memref<1x32xf32, #tpu.memory_space<vmem>>, vector<1x32xf32>
    %6 = vector.shape_cast %5 : vector<1x32xf32> to vector<32xf32>
    %c0_7 = arith.constant 0 : index
    %c0_8 = arith.constant 0 : index
    %7 = vector.load %arg8[%c0_7, %c0_8] : memref<1x32xf32, #tpu.memory_space<vmem>>, vector<1x32xf32>
    %8 = vector.shape_cast %7 : vector<1x32xf32> to vector<32xf32>
    %c0_9 = arith.constant 0 : index
    %c0_10 = arith.constant 0 : index
    %9 = vector.load %arg4[%c0_9, %c0_10] : memref<1x96xf32, #tpu.memory_space<vmem>>, vector<1x96xf32>
    %10 = vector.shape_cast %9 : vector<1x96xf32> to vector<96xf32>
    %c0_11 = arith.constant 0 : index
    %c0_12 = arith.constant 0 : index
    %11 = vector.load %arg6[%c0_11, %c0_12] : memref<1x32xf32, #tpu.memory_space<vmem>>, vector<1x32xf32>
    %12 = vector.shape_cast %11 : vector<1x32xf32> to vector<32xf32>
    %c0_13 = arith.constant 0 : index
    %c0_14 = arith.constant 0 : index
    %13 = vector.load %arg10[%c0_13, %c0_14] : memref<1x128xf32, #tpu.memory_space<vmem>>, vector<1x128xf32>
    %14 = vector.shape_cast %13 : vector<1x128xf32> to vector<128xf32>
    %c0_15 = arith.constant 0 : index
    %c0_16 = arith.constant 0 : index
    %15 = vector.load %arg12[%c0_15, %c0_16] : memref<1x32xf32, #tpu.memory_space<vmem>>, vector<1x32xf32>
    %16 = vector.shape_cast %15 : vector<1x32xf32> to vector<32xf32>
    %cst = arith.constant dense<0.000000e+00> : vector<16xf32>
    %17 = vector.multi_reduction <add>, %0, %cst [1] : vector<16x32xf32> to vector<16xf32>
    %18 = vector.shape_cast %17 : vector<16xf32> to vector<16x1xf32>
    %cst_17 = arith.constant 3.200000e+01 : f32
    %19 = vector.broadcast %cst_17 : f32 to vector<16x1xf32>
    %20 = arith.divf %18, %19 : vector<16x1xf32>
    %21 = vector.broadcast %20 : vector<16x1xf32> to vector<16x32xf32>
    %22 = arith.subf %0, %21 : vector<16x32xf32>
    %23 = arith.mulf %22, %22 : vector<16x32xf32>
    %cst_18 = arith.constant dense<0.000000e+00> : vector<16xf32>
    %24 = vector.multi_reduction <add>, %23, %cst_18 [1] : vector<16x32xf32> to vector<16xf32>
    %25 = vector.shape_cast %24 : vector<16xf32> to vector<16x1xf32>
    %cst_19 = arith.constant 3.200000e+01 : f32
    %26 = vector.broadcast %cst_19 : f32 to vector<16x1xf32>
    %27 = arith.divf %25, %26 : vector<16x1xf32>
    %cst_20 = arith.constant 9.99999997E-7 : f32
    %28 = vector.broadcast %cst_20 : f32 to vector<16x1xf32>
    %29 = arith.addf %27, %28 : vector<16x1xf32>
    %30 = math.rsqrt %29 : vector<16x1xf32>
    %31 = vector.broadcast %30 : vector<16x1xf32> to vector<16x32xf32>
    %32 = arith.mulf %22, %31 : vector<16x32xf32>
    %33 = vector.shape_cast %2 : vector<32xf32> to vector<1x32xf32>
    %34 = vector.broadcast %33 : vector<1x32xf32> to vector<16x32xf32>
    %35 = arith.mulf %32, %34 : vector<16x32xf32>
    %36 = vector.shape_cast %4 : vector<32xf32> to vector<1x32xf32>
    %37 = vector.broadcast %36 : vector<1x32xf32> to vector<16x32xf32>
    %38 = arith.addf %35, %37 : vector<16x32xf32>
    %39 = arith.truncf %38 : vector<16x32xf32> to vector<16x32xbf16>
    %c0_21 = arith.constant 0 : index
    %c0_22 = arith.constant 0 : index
    %40 = vector.load %arg3[%c0_21, %c0_22] : memref<32x96xbf16, #tpu.memory_space<vmem>>, vector<32x96xbf16>
    %cst_23 = arith.constant dense<0.000000e+00> : vector<16x96xf32>
    %41 = tpu.matmul %39, %40, %cst_23 {dimension_numbers = #tpu.dot_dimension_numbers<[1], [0], [0], [1], [0, 0, 1, 1], [], []>} : vector<16x32xbf16>, vector<32x96xbf16>, vector<16x96xf32> -> vector<16x96xf32>
    %42 = vector.shape_cast %10 : vector<96xf32> to vector<1x96xf32>
    %43 = vector.broadcast %42 : vector<1x96xf32> to vector<16x96xf32>
    %44 = arith.addf %41, %43 : vector<16x96xf32>
    %45 = vector.extract_strided_slice %44 {offsets = [0, 0], sizes = [8, 8], strides = [1, 1]} : vector<16x96xf32> to vector<8x8xf32>
    %46 = arith.truncf %45 : vector<8x8xf32> to vector<8x8xbf16>
    %47 = vector.extract_strided_slice %44 {offsets = [0, 32], sizes = [8, 8], strides = [1, 1]} : vector<16x96xf32> to vector<8x8xf32>
    %48 = arith.truncf %47 : vector<8x8xf32> to vector<8x8xbf16>
    %49 = vector.extract_strided_slice %44 {offsets = [0, 64], sizes = [8, 8], strides = [1, 1]} : vector<16x96xf32> to vector<8x8xf32>
    %50 = arith.truncf %49 : vector<8x8xf32> to vector<8x8xbf16>
    %cst_24 = arith.constant dense<0.000000e+00> : vector<8x8xf32>
    %51 = tpu.matmul %46, %48, %cst_24 {dimension_numbers = #tpu.dot_dimension_numbers<[1], [1], [0], [0], [0, 0, 1, 0], [], []>} : vector<8x8xbf16>, vector<8x8xbf16>, vector<8x8xf32> -> vector<8x8xf32>
    %cst_25 = arith.constant dense<0xFF800000> : vector<8xf32>
    %52 = vector.multi_reduction <maximumf>, %51, %cst_25 [1] : vector<8x8xf32> to vector<8xf32>
    %53 = vector.shape_cast %52 : vector<8xf32> to vector<8x1xf32>
    %54 = vector.broadcast %53 : vector<8x1xf32> to vector<8x8xf32>
    %55 = arith.subf %51, %54 : vector<8x8xf32>
    %56 = math.exp %55 : vector<8x8xf32>
    %cst_26 = arith.constant dense<0.000000e+00> : vector<8xf32>
    %57 = vector.multi_reduction <add>, %56, %cst_26 [1] : vector<8x8xf32> to vector<8xf32>
    %58 = vector.shape_cast %57 : vector<8xf32> to vector<8x1xf32>
    %59 = tpu.reciprocal %58 {approx = true} : vector<8x1xf32> -> vector<8x1xf32>
    %60 = vector.broadcast %59 : vector<8x1xf32> to vector<8x8xf32>
    %61 = arith.mulf %56, %60 : vector<8x8xf32>
    %62 = arith.truncf %61 : vector<8x8xf32> to vector<8x8xbf16>
    %cst_27 = arith.constant dense<0.000000e+00> : vector<8x8xf32>
    %63 = tpu.matmul %62, %50, %cst_27 {dimension_numbers = #tpu.dot_dimension_numbers<[1], [0], [0], [1], [0, 0, 1, 1], [], []>} : vector<8x8xbf16>, vector<8x8xbf16>, vector<8x8xf32> -> vector<8x8xf32>
    %64 = vector.extract_strided_slice %44 {offsets = [0, 8], sizes = [8, 8], strides = [1, 1]} : vector<16x96xf32> to vector<8x8xf32>
    %65 = arith.truncf %64 : vector<8x8xf32> to vector<8x8xbf16>
    %66 = vector.extract_strided_slice %44 {offsets = [0, 40], sizes = [8, 8], strides = [1, 1]} : vector<16x96xf32> to vector<8x8xf32>
    %67 = arith.truncf %66 : vector<8x8xf32> to vector<8x8xbf16>
    %68 = vector.extract_strided_slice %44 {offsets = [0, 72], sizes = [8, 8], strides = [1, 1]} : vector<16x96xf32> to vector<8x8xf32>
    %69 = arith.truncf %68 : vector<8x8xf32> to vector<8x8xbf16>
    %cst_28 = arith.constant dense<0.000000e+00> : vector<8x8xf32>
    %70 = tpu.matmul %65, %67, %cst_28 {dimension_numbers = #tpu.dot_dimension_numbers<[1], [1], [0], [0], [0, 0, 1, 0], [], []>} : vector<8x8xbf16>, vector<8x8xbf16>, vector<8x8xf32> -> vector<8x8xf32>
    %cst_29 = arith.constant dense<0xFF800000> : vector<8xf32>
    %71 = vector.multi_reduction <maximumf>, %70, %cst_29 [1] : vector<8x8xf32> to vector<8xf32>
    %72 = vector.shape_cast %71 : vector<8xf32> to vector<8x1xf32>
    %73 = vector.broadcast %72 : vector<8x1xf32> to vector<8x8xf32>
    %74 = arith.subf %70, %73 : vector<8x8xf32>
    %75 = math.exp %74 : vector<8x8xf32>
    %cst_30 = arith.constant dense<0.000000e+00> : vector<8xf32>
    %76 = vector.multi_reduction <add>, %75, %cst_30 [1] : vector<8x8xf32> to vector<8xf32>
    %77 = vector.shape_cast %76 : vector<8xf32> to vector<8x1xf32>
    %78 = tpu.reciprocal %77 {approx = true} : vector<8x1xf32> -> vector<8x1xf32>
    %79 = vector.broadcast %78 : vector<8x1xf32> to vector<8x8xf32>
    %80 = arith.mulf %75, %79 : vector<8x8xf32>
    %81 = arith.truncf %80 : vector<8x8xf32> to vector<8x8xbf16>
    %cst_31 = arith.constant dense<0.000000e+00> : vector<8x8xf32>
    %82 = tpu.matmul %81, %69, %cst_31 {dimension_numbers = #tpu.dot_dimension_numbers<[1], [0], [0], [1], [0, 0, 1, 1], [], []>} : vector<8x8xbf16>, vector<8x8xbf16>, vector<8x8xf32> -> vector<8x8xf32>
    %83 = vector.extract_strided_slice %44 {offsets = [0, 16], sizes = [8, 8], strides = [1, 1]} : vector<16x96xf32> to vector<8x8xf32>
    %84 = arith.truncf %83 : vector<8x8xf32> to vector<8x8xbf16>
    %85 = vector.extract_strided_slice %44 {offsets = [0, 48], sizes = [8, 8], strides = [1, 1]} : vector<16x96xf32> to vector<8x8xf32>
    %86 = arith.truncf %85 : vector<8x8xf32> to vector<8x8xbf16>
    %87 = vector.extract_strided_slice %44 {offsets = [0, 80], sizes = [8, 8], strides = [1, 1]} : vector<16x96xf32> to vector<8x8xf32>
    %88 = arith.truncf %87 : vector<8x8xf32> to vector<8x8xbf16>
    %cst_32 = arith.constant dense<0.000000e+00> : vector<8x8xf32>
    %89 = tpu.matmul %84, %86, %cst_32 {dimension_numbers = #tpu.dot_dimension_numbers<[1], [1], [0], [0], [0, 0, 1, 0], [], []>} : vector<8x8xbf16>, vector<8x8xbf16>, vector<8x8xf32> -> vector<8x8xf32>
    %cst_33 = arith.constant dense<0xFF800000> : vector<8xf32>
    %90 = vector.multi_reduction <maximumf>, %89, %cst_33 [1] : vector<8x8xf32> to vector<8xf32>
    %91 = vector.shape_cast %90 : vector<8xf32> to vector<8x1xf32>
    %92 = vector.broadcast %91 : vector<8x1xf32> to vector<8x8xf32>
    %93 = arith.subf %89, %92 : vector<8x8xf32>
    %94 = math.exp %93 : vector<8x8xf32>
    %cst_34 = arith.constant dense<0.000000e+00> : vector<8xf32>
    %95 = vector.multi_reduction <add>, %94, %cst_34 [1] : vector<8x8xf32> to vector<8xf32>
    %96 = vector.shape_cast %95 : vector<8xf32> to vector<8x1xf32>
    %97 = tpu.reciprocal %96 {approx = true} : vector<8x1xf32> -> vector<8x1xf32>
    %98 = vector.broadcast %97 : vector<8x1xf32> to vector<8x8xf32>
    %99 = arith.mulf %94, %98 : vector<8x8xf32>
    %100 = arith.truncf %99 : vector<8x8xf32> to vector<8x8xbf16>
    %cst_35 = arith.constant dense<0.000000e+00> : vector<8x8xf32>
    %101 = tpu.matmul %100, %88, %cst_35 {dimension_numbers = #tpu.dot_dimension_numbers<[1], [0], [0], [1], [0, 0, 1, 1], [], []>} : vector<8x8xbf16>, vector<8x8xbf16>, vector<8x8xf32> -> vector<8x8xf32>
    %102 = vector.extract_strided_slice %44 {offsets = [0, 24], sizes = [8, 8], strides = [1, 1]} : vector<16x96xf32> to vector<8x8xf32>
    %103 = arith.truncf %102 : vector<8x8xf32> to vector<8x8xbf16>
    %104 = vector.extract_strided_slice %44 {offsets = [0, 56], sizes = [8, 8], strides = [1, 1]} : vector<16x96xf32> to vector<8x8xf32>
    %105 = arith.truncf %104 : vector<8x8xf32> to vector<8x8xbf16>
    %106 = vector.extract_strided_slice %44 {offsets = [0, 88], sizes = [8, 8], strides = [1, 1]} : vector<16x96xf32> to vector<8x8xf32>
    %107 = arith.truncf %106 : vector<8x8xf32> to vector<8x8xbf16>
    %cst_36 = arith.constant dense<0.000000e+00> : vector<8x8xf32>
    %108 = tpu.matmul %103, %105, %cst_36 {dimension_numbers = #tpu.dot_dimension_numbers<[1], [1], [0], [0], [0, 0, 1, 0], [], []>} : vector<8x8xbf16>, vector<8x8xbf16>, vector<8x8xf32> -> vector<8x8xf32>
    %cst_37 = arith.constant dense<0xFF800000> : vector<8xf32>
    %109 = vector.multi_reduction <maximumf>, %108, %cst_37 [1] : vector<8x8xf32> to vector<8xf32>
    %110 = vector.shape_cast %109 : vector<8xf32> to vector<8x1xf32>
    %111 = vector.broadcast %110 : vector<8x1xf32> to vector<8x8xf32>
    %112 = arith.subf %108, %111 : vector<8x8xf32>
    %113 = math.exp %112 : vector<8x8xf32>
    %cst_38 = arith.constant dense<0.000000e+00> : vector<8xf32>
    %114 = vector.multi_reduction <add>, %113, %cst_38 [1] : vector<8x8xf32> to vector<8xf32>
    %115 = vector.shape_cast %114 : vector<8xf32> to vector<8x1xf32>
    %116 = tpu.reciprocal %115 {approx = true} : vector<8x1xf32> -> vector<8x1xf32>
    %117 = vector.broadcast %116 : vector<8x1xf32> to vector<8x8xf32>
    %118 = arith.mulf %113, %117 : vector<8x8xf32>
    %119 = arith.truncf %118 : vector<8x8xf32> to vector<8x8xbf16>
    %cst_39 = arith.constant dense<0.000000e+00> : vector<8x8xf32>
    %120 = tpu.matmul %119, %107, %cst_39 {dimension_numbers = #tpu.dot_dimension_numbers<[1], [0], [0], [1], [0, 0, 1, 1], [], []>} : vector<8x8xbf16>, vector<8x8xbf16>, vector<8x8xf32> -> vector<8x8xf32>
    %121 = tpu.concatenate %63, %82, %101, %120 in 1 : vector<8x8xf32>, vector<8x8xf32>, vector<8x8xf32>, vector<8x8xf32> -> vector<8x32xf32>
    %122 = vector.extract_strided_slice %44 {offsets = [8, 0], sizes = [8, 8], strides = [1, 1]} : vector<16x96xf32> to vector<8x8xf32>
    %123 = arith.truncf %122 : vector<8x8xf32> to vector<8x8xbf16>
    %124 = vector.extract_strided_slice %44 {offsets = [8, 32], sizes = [8, 8], strides = [1, 1]} : vector<16x96xf32> to vector<8x8xf32>
    %125 = arith.truncf %124 : vector<8x8xf32> to vector<8x8xbf16>
    %126 = vector.extract_strided_slice %44 {offsets = [8, 64], sizes = [8, 8], strides = [1, 1]} : vector<16x96xf32> to vector<8x8xf32>
    %127 = arith.truncf %126 : vector<8x8xf32> to vector<8x8xbf16>
    %cst_40 = arith.constant dense<0.000000e+00> : vector<8x8xf32>
    %128 = tpu.matmul %123, %125, %cst_40 {dimension_numbers = #tpu.dot_dimension_numbers<[1], [1], [0], [0], [0, 0, 1, 0], [], []>} : vector<8x8xbf16>, vector<8x8xbf16>, vector<8x8xf32> -> vector<8x8xf32>
    %cst_41 = arith.constant dense<0xFF800000> : vector<8xf32>
    %129 = vector.multi_reduction <maximumf>, %128, %cst_41 [1] : vector<8x8xf32> to vector<8xf32>
    %130 = vector.shape_cast %129 : vector<8xf32> to vector<8x1xf32>
    %131 = vector.broadcast %130 : vector<8x1xf32> to vector<8x8xf32>
    %132 = arith.subf %128, %131 : vector<8x8xf32>
    %133 = math.exp %132 : vector<8x8xf32>
    %cst_42 = arith.constant dense<0.000000e+00> : vector<8xf32>
    %134 = vector.multi_reduction <add>, %133, %cst_42 [1] : vector<8x8xf32> to vector<8xf32>
    %135 = vector.shape_cast %134 : vector<8xf32> to vector<8x1xf32>
    %136 = tpu.reciprocal %135 {approx = true} : vector<8x1xf32> -> vector<8x1xf32>
    %137 = vector.broadcast %136 : vector<8x1xf32> to vector<8x8xf32>
    %138 = arith.mulf %133, %137 : vector<8x8xf32>
    %139 = arith.truncf %138 : vector<8x8xf32> to vector<8x8xbf16>
    %cst_43 = arith.constant dense<0.000000e+00> : vector<8x8xf32>
    %140 = tpu.matmul %139, %127, %cst_43 {dimension_numbers = #tpu.dot_dimension_numbers<[1], [0], [0], [1], [0, 0, 1, 1], [], []>} : vector<8x8xbf16>, vector<8x8xbf16>, vector<8x8xf32> -> vector<8x8xf32>
    %141 = vector.extract_strided_slice %44 {offsets = [8, 8], sizes = [8, 8], strides = [1, 1]} : vector<16x96xf32> to vector<8x8xf32>
    %142 = arith.truncf %141 : vector<8x8xf32> to vector<8x8xbf16>
    %143 = vector.extract_strided_slice %44 {offsets = [8, 40], sizes = [8, 8], strides = [1, 1]} : vector<16x96xf32> to vector<8x8xf32>
    %144 = arith.truncf %143 : vector<8x8xf32> to vector<8x8xbf16>
    %145 = vector.extract_strided_slice %44 {offsets = [8, 72], sizes = [8, 8], strides = [1, 1]} : vector<16x96xf32> to vector<8x8xf32>
    %146 = arith.truncf %145 : vector<8x8xf32> to vector<8x8xbf16>
    %cst_44 = arith.constant dense<0.000000e+00> : vector<8x8xf32>
    %147 = tpu.matmul %142, %144, %cst_44 {dimension_numbers = #tpu.dot_dimension_numbers<[1], [1], [0], [0], [0, 0, 1, 0], [], []>} : vector<8x8xbf16>, vector<8x8xbf16>, vector<8x8xf32> -> vector<8x8xf32>
    %cst_45 = arith.constant dense<0xFF800000> : vector<8xf32>
    %148 = vector.multi_reduction <maximumf>, %147, %cst_45 [1] : vector<8x8xf32> to vector<8xf32>
    %149 = vector.shape_cast %148 : vector<8xf32> to vector<8x1xf32>
    %150 = vector.broadcast %149 : vector<8x1xf32> to vector<8x8xf32>
    %151 = arith.subf %147, %150 : vector<8x8xf32>
    %152 = math.exp %151 : vector<8x8xf32>
    %cst_46 = arith.constant dense<0.000000e+00> : vector<8xf32>
    %153 = vector.multi_reduction <add>, %152, %cst_46 [1] : vector<8x8xf32> to vector<8xf32>
    %154 = vector.shape_cast %153 : vector<8xf32> to vector<8x1xf32>
    %155 = tpu.reciprocal %154 {approx = true} : vector<8x1xf32> -> vector<8x1xf32>
    %156 = vector.broadcast %155 : vector<8x1xf32> to vector<8x8xf32>
    %157 = arith.mulf %152, %156 : vector<8x8xf32>
    %158 = arith.truncf %157 : vector<8x8xf32> to vector<8x8xbf16>
    %cst_47 = arith.constant dense<0.000000e+00> : vector<8x8xf32>
    %159 = tpu.matmul %158, %146, %cst_47 {dimension_numbers = #tpu.dot_dimension_numbers<[1], [0], [0], [1], [0, 0, 1, 1], [], []>} : vector<8x8xbf16>, vector<8x8xbf16>, vector<8x8xf32> -> vector<8x8xf32>
    %160 = vector.extract_strided_slice %44 {offsets = [8, 16], sizes = [8, 8], strides = [1, 1]} : vector<16x96xf32> to vector<8x8xf32>
    %161 = arith.truncf %160 : vector<8x8xf32> to vector<8x8xbf16>
    %162 = vector.extract_strided_slice %44 {offsets = [8, 48], sizes = [8, 8], strides = [1, 1]} : vector<16x96xf32> to vector<8x8xf32>
    %163 = arith.truncf %162 : vector<8x8xf32> to vector<8x8xbf16>
    %164 = vector.extract_strided_slice %44 {offsets = [8, 80], sizes = [8, 8], strides = [1, 1]} : vector<16x96xf32> to vector<8x8xf32>
    %165 = arith.truncf %164 : vector<8x8xf32> to vector<8x8xbf16>
    %cst_48 = arith.constant dense<0.000000e+00> : vector<8x8xf32>
    %166 = tpu.matmul %161, %163, %cst_48 {dimension_numbers = #tpu.dot_dimension_numbers<[1], [1], [0], [0], [0, 0, 1, 0], [], []>} : vector<8x8xbf16>, vector<8x8xbf16>, vector<8x8xf32> -> vector<8x8xf32>
    %cst_49 = arith.constant dense<0xFF800000> : vector<8xf32>
    %167 = vector.multi_reduction <maximumf>, %166, %cst_49 [1] : vector<8x8xf32> to vector<8xf32>
    %168 = vector.shape_cast %167 : vector<8xf32> to vector<8x1xf32>
    %169 = vector.broadcast %168 : vector<8x1xf32> to vector<8x8xf32>
    %170 = arith.subf %166, %169 : vector<8x8xf32>
    %171 = math.exp %170 : vector<8x8xf32>
    %cst_50 = arith.constant dense<0.000000e+00> : vector<8xf32>
    %172 = vector.multi_reduction <add>, %171, %cst_50 [1] : vector<8x8xf32> to vector<8xf32>
    %173 = vector.shape_cast %172 : vector<8xf32> to vector<8x1xf32>
    %174 = tpu.reciprocal %173 {approx = true} : vector<8x1xf32> -> vector<8x1xf32>
    %175 = vector.broadcast %174 : vector<8x1xf32> to vector<8x8xf32>
    %176 = arith.mulf %171, %175 : vector<8x8xf32>
    %177 = arith.truncf %176 : vector<8x8xf32> to vector<8x8xbf16>
    %cst_51 = arith.constant dense<0.000000e+00> : vector<8x8xf32>
    %178 = tpu.matmul %177, %165, %cst_51 {dimension_numbers = #tpu.dot_dimension_numbers<[1], [0], [0], [1], [0, 0, 1, 1], [], []>} : vector<8x8xbf16>, vector<8x8xbf16>, vector<8x8xf32> -> vector<8x8xf32>
    %179 = vector.extract_strided_slice %44 {offsets = [8, 24], sizes = [8, 8], strides = [1, 1]} : vector<16x96xf32> to vector<8x8xf32>
    %180 = arith.truncf %179 : vector<8x8xf32> to vector<8x8xbf16>
    %181 = vector.extract_strided_slice %44 {offsets = [8, 56], sizes = [8, 8], strides = [1, 1]} : vector<16x96xf32> to vector<8x8xf32>
    %182 = arith.truncf %181 : vector<8x8xf32> to vector<8x8xbf16>
    %183 = vector.extract_strided_slice %44 {offsets = [8, 88], sizes = [8, 8], strides = [1, 1]} : vector<16x96xf32> to vector<8x8xf32>
    %184 = arith.truncf %183 : vector<8x8xf32> to vector<8x8xbf16>
    %cst_52 = arith.constant dense<0.000000e+00> : vector<8x8xf32>
    %185 = tpu.matmul %180, %182, %cst_52 {dimension_numbers = #tpu.dot_dimension_numbers<[1], [1], [0], [0], [0, 0, 1, 0], [], []>} : vector<8x8xbf16>, vector<8x8xbf16>, vector<8x8xf32> -> vector<8x8xf32>
    %cst_53 = arith.constant dense<0xFF800000> : vector<8xf32>
    %186 = vector.multi_reduction <maximumf>, %185, %cst_53 [1] : vector<8x8xf32> to vector<8xf32>
    %187 = vector.shape_cast %186 : vector<8xf32> to vector<8x1xf32>
    %188 = vector.broadcast %187 : vector<8x1xf32> to vector<8x8xf32>
    %189 = arith.subf %185, %188 : vector<8x8xf32>
    %190 = math.exp %189 : vector<8x8xf32>
    %cst_54 = arith.constant dense<0.000000e+00> : vector<8xf32>
    %191 = vector.multi_reduction <add>, %190, %cst_54 [1] : vector<8x8xf32> to vector<8xf32>
    %192 = vector.shape_cast %191 : vector<8xf32> to vector<8x1xf32>
    %193 = tpu.reciprocal %192 {approx = true} : vector<8x1xf32> -> vector<8x1xf32>
    %194 = vector.broadcast %193 : vector<8x1xf32> to vector<8x8xf32>
    %195 = arith.mulf %190, %194 : vector<8x8xf32>
    %196 = arith.truncf %195 : vector<8x8xf32> to vector<8x8xbf16>
    %cst_55 = arith.constant dense<0.000000e+00> : vector<8x8xf32>
    %197 = tpu.matmul %196, %184, %cst_55 {dimension_numbers = #tpu.dot_dimension_numbers<[1], [0], [0], [1], [0, 0, 1, 1], [], []>} : vector<8x8xbf16>, vector<8x8xbf16>, vector<8x8xf32> -> vector<8x8xf32>
    %198 = tpu.concatenate %140, %159, %178, %197 in 1 : vector<8x8xf32>, vector<8x8xf32>, vector<8x8xf32>, vector<8x8xf32> -> vector<8x32xf32>
    %199 = tpu.concatenate %121, %198 in 0 : vector<8x32xf32>, vector<8x32xf32> -> vector<16x32xf32>
    %200 = arith.truncf %199 : vector<16x32xf32> to vector<16x32xbf16>
    %c0_56 = arith.constant 0 : index
    %c0_57 = arith.constant 0 : index
    %201 = vector.load %arg5[%c0_56, %c0_57] : memref<32x32xbf16, #tpu.memory_space<vmem>>, vector<32x32xbf16>
    %cst_58 = arith.constant dense<0.000000e+00> : vector<16x32xf32>
    %202 = tpu.matmul %200, %201, %cst_58 {dimension_numbers = #tpu.dot_dimension_numbers<[1], [0], [0], [1], [0, 0, 1, 1], [], []>} : vector<16x32xbf16>, vector<32x32xbf16>, vector<16x32xf32> -> vector<16x32xf32>
    %203 = vector.shape_cast %12 : vector<32xf32> to vector<1x32xf32>
    %204 = vector.broadcast %203 : vector<1x32xf32> to vector<16x32xf32>
    %205 = arith.addf %202, %204 : vector<16x32xf32>
    %206 = arith.addf %0, %205 : vector<16x32xf32>
    %cst_59 = arith.constant dense<0.000000e+00> : vector<16xf32>
    %207 = vector.multi_reduction <add>, %206, %cst_59 [1] : vector<16x32xf32> to vector<16xf32>
    %208 = vector.shape_cast %207 : vector<16xf32> to vector<16x1xf32>
    %cst_60 = arith.constant 3.200000e+01 : f32
    %209 = vector.broadcast %cst_60 : f32 to vector<16x1xf32>
    %210 = arith.divf %208, %209 : vector<16x1xf32>
    %211 = vector.broadcast %210 : vector<16x1xf32> to vector<16x32xf32>
    %212 = arith.subf %206, %211 : vector<16x32xf32>
    %213 = arith.mulf %212, %212 : vector<16x32xf32>
    %cst_61 = arith.constant dense<0.000000e+00> : vector<16xf32>
    %214 = vector.multi_reduction <add>, %213, %cst_61 [1] : vector<16x32xf32> to vector<16xf32>
    %215 = vector.shape_cast %214 : vector<16xf32> to vector<16x1xf32>
    %cst_62 = arith.constant 3.200000e+01 : f32
    %216 = vector.broadcast %cst_62 : f32 to vector<16x1xf32>
    %217 = arith.divf %215, %216 : vector<16x1xf32>
    %cst_63 = arith.constant 9.99999997E-7 : f32
    %218 = vector.broadcast %cst_63 : f32 to vector<16x1xf32>
    %219 = arith.addf %217, %218 : vector<16x1xf32>
    %220 = math.rsqrt %219 : vector<16x1xf32>
    %221 = vector.broadcast %220 : vector<16x1xf32> to vector<16x32xf32>
    %222 = arith.mulf %212, %221 : vector<16x32xf32>
    %223 = vector.shape_cast %6 : vector<32xf32> to vector<1x32xf32>
    %224 = vector.broadcast %223 : vector<1x32xf32> to vector<16x32xf32>
    %225 = arith.mulf %222, %224 : vector<16x32xf32>
    %226 = vector.shape_cast %8 : vector<32xf32> to vector<1x32xf32>
    %227 = vector.broadcast %226 : vector<1x32xf32> to vector<16x32xf32>
    %228 = arith.addf %225, %227 : vector<16x32xf32>
    %229 = arith.truncf %228 : vector<16x32xf32> to vector<16x32xbf16>
    %c0_64 = arith.constant 0 : index
    %c0_65 = arith.constant 0 : index
    %230 = vector.load %arg9[%c0_64, %c0_65] : memref<32x128xbf16, #tpu.memory_space<vmem>>, vector<32x128xbf16>
    %cst_66 = arith.constant dense<0.000000e+00> : vector<16x128xf32>
    %231 = tpu.matmul %229, %230, %cst_66 {dimension_numbers = #tpu.dot_dimension_numbers<[1], [0], [0], [1], [0, 0, 1, 1], [], []>} : vector<16x32xbf16>, vector<32x128xbf16>, vector<16x128xf32> -> vector<16x128xf32>
    %232 = vector.shape_cast %14 : vector<128xf32> to vector<1x128xf32>
    %233 = vector.broadcast %232 : vector<1x128xf32> to vector<16x128xf32>
    %234 = arith.addf %231, %233 : vector<16x128xf32>
    %cst_67 = arith.constant 1.702000e+00 : f32
    %235 = vector.broadcast %cst_67 : f32 to vector<16x128xf32>
    %236 = arith.mulf %235, %234 : vector<16x128xf32>
    %237 = arith.negf %236 : vector<16x128xf32>
    %238 = math.exp %237 : vector<16x128xf32>
    %cst_68 = arith.constant 1.000000e+00 : f32
    %239 = vector.broadcast %cst_68 : f32 to vector<16x128xf32>
    %240 = arith.addf %239, %238 : vector<16x128xf32>
    %241 = arith.divf %239, %240 : vector<16x128xf32>
    %242 = arith.mulf %234, %241 : vector<16x128xf32>
    %243 = arith.truncf %242 : vector<16x128xf32> to vector<16x128xbf16>
    %c0_69 = arith.constant 0 : index
    %c0_70 = arith.constant 0 : index
    %244 = vector.load %arg11[%c0_69, %c0_70] : memref<128x32xbf16, #tpu.memory_space<vmem>>, vector<128x32xbf16>
    %cst_71 = arith.constant dense<0.000000e+00> : vector<16x32xf32>
    %245 = tpu.matmul %243, %244, %cst_71 {dimension_numbers = #tpu.dot_dimension_numbers<[1], [0], [0], [1], [0, 0, 1, 1], [], []>} : vector<16x128xbf16>, vector<128x32xbf16>, vector<16x32xf32> -> vector<16x32xf32>
    %246 = vector.shape_cast %16 : vector<32xf32> to vector<1x32xf32>
    %247 = vector.broadcast %246 : vector<1x32xf32> to vector<16x32xf32>
    %248 = arith.addf %245, %247 : vector<16x32xf32>
    %249 = arith.addf %206, %248 : vector<16x32xf32>
    %c0_72 = arith.constant 0 : index
    %c0_73 = arith.constant 0 : index
    %250 = vector.load %arg13[%c0_72, %c0_73] : memref<16x32xf32, #tpu.memory_space<vmem>>, vector<16x32xf32>
    tpu.vector_store %arg13[%c0_72, %c0_73], %249 {strides = array<i32>} : memref<16x32xf32, #tpu.memory_space<vmem>>, vector<16x32xf32>,
    return
  }
}

</mosaic_0001>

<llo_original>
// kernel: vit_layer.1
$region0: #{vit_layer.1}
  #allocation0 [shape = 'u32[]', space=smem, size = 0x4, offset = 0x4, fixed_abs, tag = 'smem constant byte address 0x4 - core index']
  #allocation1 [shape = 'u32[144,128]{1,0:T(1,128)}', space=vmem, size = 0x12000, scoped, tag = 'internal scratch']
  %s0 = inlined_call_operand.vmem [shape: f32[16,32], index: 0, kind: input, shape index: {}]
  %s1 = inlined_call_operand.vmem [shape: f32[1,32], index: 1, kind: input, shape index: {}]
  %s2 = inlined_call_operand.vmem [shape: f32[1,32], index: 2, kind: input, shape index: {}]
  %s3 = inlined_call_operand.vmem [shape: bf16[32,96], index: 3, kind: input, shape index: {}]
  %s4 = inlined_call_operand.vmem [shape: f32[1,96], index: 4, kind: input, shape index: {}]
  %s5 = inlined_call_operand.vmem [shape: bf16[32,32], index: 5, kind: input, shape index: {}]
  %s6 = inlined_call_operand.vmem [shape: f32[1,32], index: 6, kind: input, shape index: {}]
  %s7 = inlined_call_operand.vmem [shape: f32[1,32], index: 7, kind: input, shape index: {}]
  %s8 = inlined_call_operand.vmem [shape: f32[1,32], index: 8, kind: input, shape index: {}]
  %s9 = inlined_call_operand.vmem [shape: bf16[32,128], index: 9, kind: input, shape index: {}]
  %s10 = inlined_call_operand.vmem [shape: f32[1,128], index: 10, kind: input, shape index: {}]
  %s11 = inlined_call_operand.vmem [shape: bf16[128,32], index: 11, kind: input, shape index: {}]
  %s12 = inlined_call_operand.vmem [shape: f32[1,32], index: 12, kind: input, shape index: {}]
  %s13 = inlined_call_operand.hbm [shape: f32[16,32], index: 13, kind: output, shape index: {}]
  %s14 = sld [smem:[#allocation0]]
  $region62: #{vit_layer.1} parent=0
    _
  %s16 = ssub.s32 1, %s14
  %s17 = scalar_select 0, %s16, %s14
  $region1: #{vit_layer.1} parent=0
    #allocation2 [shape = 'u8[8192]{0}', space=vmem, size = 0x2000, scoped, tag = 'output window, operand 0, single buffered']
    #allocation3 [shape = 's32[1]{0}', space=sflag, size = 0x4, scoped, tag = 'scoped memory for vit_layer.1']
    %18 = vsyncpa [#allocation3], 0
    // Predicated region
    $region2: #{vit_layer.1} parent=1 // pred_check
      _
    $region3: #{vit_layer.1} parent=1 // pred_check_branch
      %20 = sbr.rel (0) target = $region5
    $region4: #{vit_layer.1} parent=1 // pred_region
      _
    $region5: #{vit_layer.1} parent=1 // pred_fallthru
      _
    // Predicated region
    $region6: #{vit_layer.1} parent=1 // pred_check
      _
    $region7: #{vit_layer.1} parent=1 // pred_check_branch
      %22 = sbr.rel (0) target = $region9
    $region8: #{vit_layer.1} parent=1 // pred_region
      _
    $region9: #{vit_layer.1} parent=1 // pred_fallthru
      _
    // Predicated region
    $region10: #{vit_layer.1} parent=1 // pred_check
      _
    $region11: #{vit_layer.1} parent=1 // pred_check_branch
      %24 = sbr.rel (0) target = $region13
    $region12: #{vit_layer.1} parent=1 // pred_region
      _
    $region13: #{vit_layer.1} parent=1 // pred_fallthru
      _
    // Predicated region
    $region14: #{vit_layer.1} parent=1 // pred_check
      _
    $region15: #{vit_layer.1} parent=1 // pred_check_branch
      %26 = sbr.rel (0) target = $region17
    $region16: #{vit_layer.1} parent=1 // pred_region
      _
    $region17: #{vit_layer.1} parent=1 // pred_fallthru
      _
    // Predicated region
    $region18: #{vit_layer.1} parent=1 // pred_check
      _
    $region19: #{vit_layer.1} parent=1 // pred_check_branch
      %28 = sbr.rel (0) target = $region21
    $region20: #{vit_layer.1} parent=1 // pred_region
      _
    $region21: #{vit_layer.1} parent=1 // pred_fallthru
      _
    // Predicated region
    $region22: #{vit_layer.1} parent=1 // pred_check
      _
    $region23: #{vit_layer.1} parent=1 // pred_check_branch
      %30 = sbr.rel (0) target = $region25
    $region24: #{vit_layer.1} parent=1 // pred_region
      _
    $region25: #{vit_layer.1} parent=1 // pred_fallthru
      _
    // Predicated region
    $region26: #{vit_layer.1} parent=1 // pred_check
      _
    $region27: #{vit_layer.1} parent=1 // pred_check_branch
      %32 = sbr.rel (0) target = $region29
    $region28: #{vit_layer.1} parent=1 // pred_region
      _
    $region29: #{vit_layer.1} parent=1 // pred_fallthru
      _
    // Predicated region
    $region30: #{vit_layer.1} parent=1 // pred_check
      _
    $region31: #{vit_layer.1} parent=1 // pred_check_branch
      %34 = sbr.rel (0) target = $region33
    $region32: #{vit_layer.1} parent=1 // pred_region
      _
    $region33: #{vit_layer.1} parent=1 // pred_fallthru
      _
    // Predicated region
    $region34: #{vit_layer.1} parent=1 // pred_check
      _
    $region35: #{vit_layer.1} parent=1 // pred_check_branch
      %36 = sbr.rel (0) target = $region37
    $region36: #{vit_layer.1} parent=1 // pred_region
      _
    $region37: #{vit_layer.1} parent=1 // pred_fallthru
      _
    // Predicated region
    $region38: #{vit_layer.1} parent=1 // pred_check
      _
    $region39: #{vit_layer.1} parent=1 // pred_check_branch
      %38 = sbr.rel (0) target = $region41
    $region40: #{vit_layer.1} parent=1 // pred_region
      _
    $region41: #{vit_layer.1} parent=1 // pred_fallthru
      _
    // Predicated region
    $region42: #{vit_layer.1} parent=1 // pred_check
      _
    $region43: #{vit_layer.1} parent=1 // pred_check_branch
      %40 = sbr.rel (0) target = $region45
    $region44: #{vit_layer.1} parent=1 // pred_region
      _
    $region45: #{vit_layer.1} parent=1 // pred_fallthru
      _
    // Predicated region
    $region46: #{vit_layer.1} parent=1 // pred_check
      _
    $region47: #{vit_layer.1} parent=1 // pred_check_branch
      %42 = sbr.rel (0) target = $region49
    $region48: #{vit_layer.1} parent=1 // pred_region
      _
    $region49: #{vit_layer.1} parent=1 // pred_fallthru
      _
    // Predicated region
    $region50: #{vit_layer.1} parent=1 // pred_check
      _
    $region51: #{vit_layer.1} parent=1 // pred_check_branch
      %44 = sbr.rel (0) target = $region53
    $region52: #{vit_layer.1} parent=1 // pred_region
      _
    $region53: #{vit_layer.1} parent=1 // pred_fallthru
      _
    %v46 = vld [vmem:[%s0] sm:$0xff]
    %v47 = vld [vmem:[%s0 + $0x8] sm:$0xff]
    %v48 = vld [vmem:[%s1] sm:$0x1]
    %v49 = vld [vmem:[%s2] sm:$0x1]
    %v50 = vld [vmem:[%s7] sm:$0x1]
    %v51 = vld [vmem:[%s8] sm:$0x1]
    %v52 = vld [vmem:[%s4] sm:$0x1]
    %v53 = vld [vmem:[%s6] sm:$0x1]
    %v54 = vld [vmem:[%s10] sm:$0x1]
    %v55 = vld [vmem:[%s12] sm:$0x1]
    %vm56 = vcmask 261120
    %v57 = vsel %vm56, %v46, 0.0
    %58 = vadd.xlane.f32.xlu0 %v57
    %v59 = vpop.xlane.xlu0 %58
    %v60 = vsel %vm56, %v47, 0.0
    %61 = vadd.xlane.f32.xlu0 %v60
    %v62 = vpop.xlane.xlu0 %61
    %v63 = vrcp.pop 32.0
    %v64 = vmul.f32 %v59, %v63
    %v65 = vmul.f32 %v62, %v63
    %v66 = vsub.f32 %v46, %v64
    %v67 = vsub.f32 %v47, %v65
    %v68 = vmul.f32 %v66, %v66
    %v69 = vmul.f32 %v67, %v67
    %v70 = vsel %vm56, %v68, 0.0
    %71 = vadd.xlane.f32.xlu0 %v70
    %v72 = vpop.xlane.xlu0 %71
    %v73 = vsel %vm56, %v69, 0.0
    %74 = vadd.xlane.f32.xlu0 %v73
    %v75 = vpop.xlane.xlu0 %74
    %v76 = vmul.f32 %v72, %v63
    %v77 = vmul.f32 %v75, %v63
    %v78 = vadd.f32 %v76, 1e-06
    %v79 = vadd.f32 %v77, 1e-06
    %v80 = vrsqrt.pop %v78
    %v81 = vrsqrt.pop %v79
    %v82 = vmul.f32 %v66, %v80
    %v83 = vmul.f32 %v67, %v81
    %v85 = vlaneseq
    %v86 = vshrl.u32 %v85, 7
    %v87 = vsub.s32 0, %v86
    %v88 = vrot.slane %v48, %v87
    %v90 = vmul.f32 %v82, %v88
    %v91 = vmul.f32 %v83, %v88
    %v93 = vlaneseq
    %v94 = vshrl.u32 %v93, 7
    %v95 = vsub.s32 0, %v94
    %v96 = vrot.slane %v49, %v95
    %v98 = vadd.f32 %v90, %v96
    %v99 = vadd.f32 %v91, %v96
    %v100 = vpack.c.bf16 %v99, %v98
    %v101 = vld [vmem:[%s3] sm:$0xf]
    %v102 = vld [vmem:[%s3 + $0x4] sm:$0xf]
    %v103 = vld [vmem:[%s3 + $0x8] sm:$0xf]
    %v104 = vld [vmem:[%s3 + $0xc] sm:$0xf]
    %v106 = vlaneseq
    %v107 = vshrl.u32 %v106, 7
    %v108 = vsub.s32 0, %v107
    %v109 = vrot.slane %v52, %v108
    %v115 = vunpack.c.l.b16 %v101
    %v116 = vunpack.c.l.b16 %v102
    %v117 = vunpack.c.l.b16 %v103
    %v118 = vunpack.c.l.b16 %v104
    %v119 = vpack.c.b16 %v116, %v115
    %v120 = vpack.c.b16 %v118, %v117
    %v124 = vsel %vm56, %v100, 0
    %126 = vmatprep.subr.bf16.mxu0 0
    %127 = vmatpush1.bf16.msra.mxu0 %v119
    %128 = vmatprep.subr.bf16.mxu0 0
    %129 = vmatpush1.bf16.msra.mxu0 %v120
    %130 = vmatprep.subr.bf16.mxu0 0
    %131 = vmatpush1.bf16.msra.mxu0 0
    %132 = vmatprep.subr.bf16.mxu0 0
    %133 = vmatpush1.bf16.msra.mxu0 0
    %134 = vmatprep.subr.bf16.mxu0 0
    %135 = vmatpush1.bf16.msra.mxu0 0
    %136 = vmatprep.subr.bf16.mxu0 0
    %137 = vmatpush1.bf16.msra.mxu0 0
    %138 = vmatprep.subr.bf16.mxu0 0
    %139 = vmatpush1.bf16.msra.mxu0 0
    %140 = vmatprep.subr.bf16.mxu0 0
    %141 = vmatpush1.bf16.msra.mxu0 0
    %142 = vmatprep.subr.bf16.mxu0 0
    %143 = vmatpush1.bf16.msra.mxu0 0
    %144 = vmatprep.subr.bf16.mxu0 0
    %145 = vmatpush1.bf16.msra.mxu0 0
    %146 = vmatprep.subr.bf16.mxu0 0
    %147 = vmatpush1.bf16.msra.mxu0 0
    %148 = vmatprep.subr.bf16.mxu0 0
    %149 = vmatpush1.bf16.msra.mxu0 0
    %150 = vmatprep.subr.bf16.mxu0 0
    %151 = vmatpush1.bf16.msra.mxu0 0
    %152 = vmatprep.subr.bf16.mxu0 0
    %153 = vmatpush1.bf16.msra.mxu0 0
    %154 = vmatprep.subr.bf16.mxu0 0
    %155 = vmatpush1.bf16.msra.mxu0 0
    %156 = vmatprep.subr.bf16.mxu0 0
    %157 = vmatpush1.bf16.msra.mxu0 0
    %158 = vmatprep.mubr.bf16.mxu0 0
    %159 = vmatmul.mubr.bf16.gmra.mrb[0].mxu0 %v124
    %v160 = vpop.f32.mrb[0].mxu0
    %v161 = vadd.f32 %v109, %v160
    %v162 = vpop.f32.mrb[0].mxu0
    %v163 = vpop.f32.mrb[0].mxu0
    %v164 = vadd.f32 %v109, %v163
    %v165 = vpop.f32.mrb[0].mxu0
    %166 = vdwg.mxu0
    %v167 = vpack.c.bf16 %v161, %v161
    %169 = vrot.lane.b32.xlu0 %v167, 96
    %v170 = vpop.permute.xlu0 %169
    %vm171 = vcmask 64512
    %v173 = vsel %vm171, %v167, 0
    %v176 = vsel %vm171, %v170, 0
    %178 = vmatprep.subr.bf16.mxu0 0
    %179 = vmatpush1.bf16.xpose.msra.mxu0 %v176
    %180 = vmatprep.subr.bf16.mxu0 0
    %181 = vmatpush1.bf16.xpose.msra.mxu0 0
    %182 = vmatprep.subr.bf16.mxu0 0
    %183 = vmatpush1.bf16.xpose.msra.mxu0 0
    %184 = vmatprep.subr.bf16.mxu0 0
    %185 = vmatpush1.bf16.xpose.msra.mxu0 0
    %186 = vmatprep.subr.bf16.mxu0 0
    %187 = vmatpush1.bf16.xpose.msra.mxu0 0
    %188 = vmatprep.subr.bf16.mxu0 0
    %189 = vmatpush1.bf16.xpose.msra.mxu0 0
    %190 = vmatprep.subr.bf16.mxu0 0
    %191 = vmatpush1.bf16.xpose.msra.mxu0 0
    %192 = vmatprep.subr.bf16.mxu0 0
    %193 = vmatpush1.bf16.xpose.msra.mxu0 0
    %194 = vmatprep.subr.bf16.mxu0 0
    %195 = vmatpush1.bf16.xpose.msra.mxu0 0
    %196 = vmatprep.subr.bf16.mxu0 0
    %197 = vmatpush1.bf16.xpose.msra.mxu0 0
    %198 = vmatprep.subr.bf16.mxu0 0
    %199 = vmatpush1.bf16.xpose.msra.mxu0 0
    %200 = vmatprep.subr.bf16.mxu0 0
    %201 = vmatpush1.bf16.xpose.msra.mxu0 0
    %202 = vmatprep.subr.bf16.mxu0 0
    %203 = vmatpush1.bf16.xpose.msra.mxu0 0
    %204 = vmatprep.subr.bf16.mxu0 0
    %205 = vmatpush1.bf16.xpose.msra.mxu0 0
    %206 = vmatprep.subr.bf16.mxu0 0
    %207 = vmatpush1.bf16.xpose.msra.mxu0 0
    %208 = vmatprep.subr.bf16.mxu0 0
    %209 = vmatpush1.bf16.xpose.msra.mxu0 0
    %210 = vmatprep.mubr.bf16.mxu0 0
    %211 = vmatmul.mubr.bf16.gmra.mrb[0].mxu0 %v173
    %v212 = vpop.f32.mrb[0].mxu0
    %v213 = vadd.f32 0.0, %v212
    %v214 = vpop.f32.mrb[0].mxu0
    %v215 = vpop.f32.mrb[0].mxu0
    %v216 = vpop.f32.mrb[0].mxu0
    %217 = vdwg.mxu0
    %v218 = vsel %vm171, %v213, -inf
    %219 = vmax.xlane.f32.xlu0 %v218
    %v220 = vpop.xlane.xlu0 %219
    %v221 = vsub.f32 %v213, %v220
    %v222 = vmul.f32 %v221, 1.442695
    %v223 = vpow.pop %v222
    %v224 = vsel %vm171, %v223, 0.0
    %225 = vadd.xlane.f32.xlu0 %v224
    %v226 = vpop.xlane.xlu0 %225
    %v227 = vrcp.pop %v226
    %v228 = vmul.f32 %v223, %v227
    %v229 = vpack.c.bf16 %v228, %v228
    %230 = vrot.lane.b32.xlu0 %v167, 64
    %v231 = vpop.permute.xlu0 %230
    %v233 = vsel %vm171, %v229, 0
    %vm235 = vcmask 1043456
    %v237 = vsel %vm235, %v231, 0
    %239 = vmatprep.subr.bf16.mxu0 0
    %240 = vmatpush1.bf16.msra.mxu0 %v237
    %241 = vmatprep.subr.bf16.mxu0 0
    %242 = vmatpush1.bf16.msra.mxu0 0
    %243 = vmatprep.subr.bf16.mxu0 0
    %244 = vmatpush1.bf16.msra.mxu0 0
    %245 = vmatprep.subr.bf16.mxu0 0
    %246 = vmatpush1.bf16.msra.mxu0 0
    %247 = vmatprep.subr.bf16.mxu0 0
    %248 = vmatpush1.bf16.msra.mxu0 0
    %249 = vmatprep.subr.bf16.mxu0 0
    %250 = vmatpush1.bf16.msra.mxu0 0
    %251 = vmatprep.subr.bf16.mxu0 0
    %252 = vmatpush1.bf16.msra.mxu0 0
    %253 = vmatprep.subr.bf16.mxu0 0
    %254 = vmatpush1.bf16.msra.mxu0 0
    %255 = vmatprep.subr.bf16.mxu0 0
    %256 = vmatpush1.bf16.msra.mxu0 0
    %257 = vmatprep.subr.bf16.mxu0 0
    %258 = vmatpush1.bf16.msra.mxu0 0
    %259 = vmatprep.subr.bf16.mxu0 0
    %260 = vmatpush1.bf16.msra.mxu0 0
    %261 = vmatprep.subr.bf16.mxu0 0
    %262 = vmatpush1.bf16.msra.mxu0 0
    %263 = vmatprep.subr.bf16.mxu0 0
    %264 = vmatpush1.bf16.msra.mxu0 0
    %265 = vmatprep.subr.bf16.mxu0 0
    %266 = vmatpush1.bf16.msra.mxu0 0
    %267 = vmatprep.subr.bf16.mxu0 0
    %268 = vmatpush1.bf16.msra.mxu0 0
    %269 = vmatprep.subr.bf16.mxu0 0
    %270 = vmatpush1.bf16.msra.mxu0 0
    %271 = vmatprep.mubr.bf16.mxu0 0
    %272 = vmatmul.mubr.bf16.gmra.mrb[0].mxu0 %v233
    %v273 = vpop.f32.mrb[0].mxu0
    %v274 = vadd.f32 0.0, %v273
    %v275 = vpop.f32.mrb[0].mxu0
    %v276 = vpop.f32.mrb[0].mxu0
    %v277 = vpop.f32.mrb[0].mxu0
    %278 = vdwg.mxu0
    %279 = vrot.lane.b32.xlu0 %v167, 120
    %v280 = vpop.permute.xlu0 %279
    %281 = vrot.lane.b32.xlu0 %v167, 88
    %v282 = vpop.permute.xlu0 %281
    %v284 = vsel %vm171, %v280, 0
    %v287 = vsel %vm171, %v282, 0
    %289 = vmatprep.subr.bf16.mxu0 0
    %290 = vmatpush1.bf16.xpose.msra.mxu0 %v287
    %291 = vmatprep.subr.bf16.mxu0 0
    %292 = vmatpush1.bf16.xpose.msra.mxu0 0
    %293 = vmatprep.subr.bf16.mxu0 0
    %294 = vmatpush1.bf16.xpose.msra.mxu0 0
    %295 = vmatprep.subr.bf16.mxu0 0
    %296 = vmatpush1.bf16.xpose.msra.mxu0 0
    %297 = vmatprep.subr.bf16.mxu0 0
    %298 = vmatpush1.bf16.xpose.msra.mxu0 0
    %299 = vmatprep.subr.bf16.mxu0 0
    %300 = vmatpush1.bf16.xpose.msra.mxu0 0
    %301 = vmatprep.subr.bf16.mxu0 0
    %302 = vmatpush1.bf16.xpose.msra.mxu0 0
    %303 = vmatprep.subr.bf16.mxu0 0
    %304 = vmatpush1.bf16.xpose.msra.mxu0 0
    %305 = vmatprep.subr.bf16.mxu0 0
    %306 = vmatpush1.bf16.xpose.msra.mxu0 0
    %307 = vmatprep.subr.bf16.mxu0 0
    %308 = vmatpush1.bf16.xpose.msra.mxu0 0
    %309 = vmatprep.subr.bf16.mxu0 0
    %310 = vmatpush1.bf16.xpose.msra.mxu0 0
    %311 = vmatprep.subr.bf16.mxu0 0
    %312 = vmatpush1.bf16.xpose.msra.mxu0 0
    %313 = vmatprep.subr.bf16.mxu0 0
    %314 = vmatpush1.bf16.xpose.msra.mxu0 0
    %315 = vmatprep.subr.bf16.mxu0 0
    %316 = vmatpush1.bf16.xpose.msra.mxu0 0
    %317 = vmatprep.subr.bf16.mxu0 0
    %318 = vmatpush1.bf16.xpose.msra.mxu0 0
    %319 = vmatprep.subr.bf16.mxu0 0
    %320 = vmatpush1.bf16.xpose.msra.mxu0 0
    %321 = vmatprep.mubr.bf16.mxu0 0
    %322 = vmatmul.mubr.bf16.gmra.mrb[0].mxu0 %v284
    %v323 = vpop.f32.mrb[0].mxu0
    %v324 = vadd.f32 0.0, %v323
    %v325 = vpop.f32.mrb[0].mxu0
    %v326 = vpop.f32.mrb[0].mxu0
    %v327 = vpop.f32.mrb[0].mxu0
    %328 = vdwg.mxu0
    %v329 = vsel %vm171, %v324, -inf
    %330 = vmax.xlane.f32.xlu0 %v329
    %v331 = vpop.xlane.xlu0 %330
    %v332 = vsub.f32 %v324, %v331
    %v333 = vmul.f32 %v332, 1.442695
    %v334 = vpow.pop %v333
    %v335 = vsel %vm171, %v334, 0.0
    %336 = vadd.xlane.f32.xlu0 %v335
    %v337 = vpop.xlane.xlu0 %336
    %v338 = vrcp.pop %v337
    %v339 = vmul.f32 %v334, %v338
    %v340 = vpack.c.bf16 %v339, %v339
    %341 = vrot.lane.b32.xlu0 %v167, 56
    %v342 = vpop.permute.xlu0 %341
    %v344 = vsel %vm171, %v340, 0
    %v347 = vsel %vm235, %v342, 0
    %349 = vmatprep.subr.bf16.mxu0 0
    %350 = vmatpush1.bf16.msra.mxu0 %v347
    %351 = vmatprep.subr.bf16.mxu0 0
    %352 = vmatpush1.bf16.msra.mxu0 0
    %353 = vmatprep.subr.bf16.mxu0 0
    %354 = vmatpush1.bf16.msra.mxu0 0
    %355 = vmatprep.subr.bf16.mxu0 0
    %356 = vmatpush1.bf16.msra.mxu0 0
    %357 = vmatprep.subr.bf16.mxu0 0
    %358 = vmatpush1.bf16.msra.mxu0 0
    %359 = vmatprep.subr.bf16.mxu0 0
    %360 = vmatpush1.bf16.msra.mxu0 0
    %361 = vmatprep.subr.bf16.mxu0 0
    %362 = vmatpush1.bf16.msra.mxu0 0
    %363 = vmatprep.subr.bf16.mxu0 0
    %364 = vmatpush1.bf16.msra.mxu0 0
    %365 = vmatprep.subr.bf16.mxu0 0
    %366 = vmatpush1.bf16.msra.mxu0 0
    %367 = vmatprep.subr.bf16.mxu0 0
    %368 = vmatpush1.bf16.msra.mxu0 0
    %369 = vmatprep.subr.bf16.mxu0 0
    %370 = vmatpush1.bf16.msra.mxu0 0
    %371 = vmatprep.subr.bf16.mxu0 0
    %372 = vmatpush1.bf16.msra.mxu0 0
    %373 = vmatprep.subr.bf16.mxu0 0
    %374 = vmatpush1.bf16.msra.mxu0 0
    %375 = vmatprep.subr.bf16.mxu0 0
    %376 = vmatpush1.bf16.msra.mxu0 0
    %377 = vmatprep.subr.bf16.mxu0 0
    %378 = vmatpush1.bf16.msra.mxu0 0
    %379 = vmatprep.subr.bf16.mxu0 0
    %380 = vmatpush1.bf16.msra.mxu0 0
    %381 = vmatprep.mubr.bf16.mxu0 0
    %382 = vmatmul.mubr.bf16.gmra.mrb[0].mxu0 %v344
    %v383 = vpop.f32.mrb[0].mxu0
    %v384 = vadd.f32 0.0, %v383
    %v385 = vpop.f32.mrb[0].mxu0
    %v386 = vpop.f32.mrb[0].mxu0
    %v387 = vpop.f32.mrb[0].mxu0
    %388 = vdwg.mxu0
    %389 = vrot.lane.b32.xlu0 %v167, 112
    %v390 = vpop.permute.xlu0 %389
    %391 = vrot.lane.b32.xlu0 %v167, 80
    %v392 = vpop.permute.xlu0 %391
    %v394 = vsel %vm171, %v390, 0
    %v397 = vsel %vm171, %v392, 0
    %399 = vmatprep.subr.bf16.mxu0 0
    %400 = vmatpush1.bf16.xpose.msra.mxu0 %v397
    %401 = vmatprep.subr.bf16.mxu0 0
    %402 = vmatpush1.bf16.xpose.msra.mxu0 0
    %403 = vmatprep.subr.bf16.mxu0 0
    %404 = vmatpush1.bf16.xpose.msra.mxu0 0
    %405 = vmatprep.subr.bf16.mxu0 0
    %406 = vmatpush1.bf16.xpose.msra.mxu0 0
    %407 = vmatprep.subr.bf16.mxu0 0
    %408 = vmatpush1.bf16.xpose.msra.mxu0 0
    %409 = vmatprep.subr.bf16.mxu0 0
    %410 = vmatpush1.bf16.xpose.msra.mxu0 0
    %411 = vmatprep.subr.bf16.mxu0 0
    %412 = vmatpush1.bf16.xpose.msra.mxu0 0
    %413 = vmatprep.subr.bf16.mxu0 0
    %414 = vmatpush1.bf16.xpose.msra.mxu0 0
    %415 = vmatprep.subr.bf16.mxu0 0
    %416 = vmatpush1.bf16.xpose.msra.mxu0 0
    %417 = vmatprep.subr.bf16.mxu0 0
    %418 = vmatpush1.bf16.xpose.msra.mxu0 0
    %419 = vmatprep.subr.bf16.mxu0 0
    %420 = vmatpush1.bf16.xpose.msra.mxu0 0
    %421 = vmatprep.subr.bf16.mxu0 0
    %422 = vmatpush1.bf16.xpose.msra.mxu0 0
    %423 = vmatprep.subr.bf16.mxu0 0
    %424 = vmatpush1.bf16.xpose.msra.mxu0 0
    %425 = vmatprep.subr.bf16.mxu0 0
    %426 = vmatpush1.bf16.xpose.msra.mxu0 0
    %427 = vmatprep.subr.bf16.mxu0 0
    %428 = vmatpush1.bf16.xpose.msra.mxu0 0
    %429 = vmatprep.subr.bf16.mxu0 0
    %430 = vmatpush1.bf16.xpose.msra.mxu0 0
    %431 = vmatprep.mubr.bf16.mxu0 0
    %432 = vmatmul.mubr.bf16.gmra.mrb[0].mxu0 %v394
    %v433 = vpop.f32.mrb[0].mxu0
    %v434 = vadd.f32 0.0, %v433
    %v435 = vpop.f32.mrb[0].mxu0
    %v436 = vpop.f32.mrb[0].mxu0
    %v437 = vpop.f32.mrb[0].mxu0
    %438 = vdwg.mxu0
    %v439 = vsel %vm171, %v434, -inf
    %440 = vmax.xlane.f32.xlu0 %v439
    %v441 = vpop.xlane.xlu0 %440
    %v442 = vsub.f32 %v434, %v441
    %v443 = vmul.f32 %v442, 1.442695
    %v444 = vpow.pop %v443
    %v445 = vsel %vm171, %v444, 0.0
    %446 = vadd.xlane.f32.xlu0 %v445
    %v447 = vpop.xlane.xlu0 %446
    %v448 = vrcp.pop %v447
    %v449 = vmul.f32 %v444, %v448
    %v450 = vpack.c.bf16 %v449, %v449
    %451 = vrot.lane.b32.xlu0 %v167, 48
    %v452 = vpop.permute.xlu0 %451
    %v454 = vsel %vm171, %v450, 0
    %v457 = vsel %vm235, %v452, 0
    %459 = vmatprep.subr.bf16.mxu0 0
    %460 = vmatpush1.bf16.msra.mxu0 %v457
    %461 = vmatprep.subr.bf16.mxu0 0
    %462 = vmatpush1.bf16.msra.mxu0 0
    %463 = vmatprep.subr.bf16.mxu0 0
    %464 = vmatpush1.bf16.msra.mxu0 0
    %465 = vmatprep.subr.bf16.mxu0 0
    %466 = vmatpush1.bf16.msra.mxu0 0
    %467 = vmatprep.subr.bf16.mxu0 0
    %468 = vmatpush1.bf16.msra.mxu0 0
    %469 = vmatprep.subr.bf16.mxu0 0
    %470 = vmatpush1.bf16.msra.mxu0 0
    %471 = vmatprep.subr.bf16.mxu0 0
    %472 = vmatpush1.bf16.msra.mxu0 0
    %473 = vmatprep.subr.bf16.mxu0 0
    %474 = vmatpush1.bf16.msra.mxu0 0
    %475 = vmatprep.subr.bf16.mxu0 0
    %476 = vmatpush1.bf16.msra.mxu0 0
    %477 = vmatprep.subr.bf16.mxu0 0
    %478 = vmatpush1.bf16.msra.mxu0 0
    %479 = vmatprep.subr.bf16.mxu0 0
    %480 = vmatpush1.bf16.msra.mxu0 0
    %481 = vmatprep.subr.bf16.mxu0 0
    %482 = vmatpush1.bf16.msra.mxu0 0
    %483 = vmatprep.subr.bf16.mxu0 0
    %484 = vmatpush1.bf16.msra.mxu0 0
    %485 = vmatprep.subr.bf16.mxu0 0
    %486 = vmatpush1.bf16.msra.mxu0 0
    %487 = vmatprep.subr.bf16.mxu0 0
    %488 = vmatpush1.bf16.msra.mxu0 0
    %489 = vmatprep.subr.bf16.mxu0 0
    %490 = vmatpush1.bf16.msra.mxu0 0
    %491 = vmatprep.mubr.bf16.mxu0 0
    %492 = vmatmul.mubr.bf16.gmra.mrb[0].mxu0 %v454
    %v493 = vpop.f32.mrb[0].mxu0
    %v494 = vadd.f32 0.0, %v493
    %v495 = vpop.f32.mrb[0].mxu0
    %v496 = vpop.f32.mrb[0].mxu0
    %v497 = vpop.f32.mrb[0].mxu0
    %498 = vdwg.mxu0
    %499 = vrot.lane.b32.xlu0 %v167, 104
    %v500 = vpop.permute.xlu0 %499
    %501 = vrot.lane.b32.xlu0 %v167, 72
    %v502 = vpop.permute.xlu0 %501
    %v504 = vsel %vm171, %v500, 0
    %v507 = vsel %vm171, %v502, 0
    %509 = vmatprep.subr.bf16.mxu0 0
    %510 = vmatpush1.bf16.xpose.msra.mxu0 %v507
    %511 = vmatprep.subr.bf16.mxu0 0
    %512 = vmatpush1.bf16.xpose.msra.mxu0 0
    %513 = vmatprep.subr.bf16.mxu0 0
    %514 = vmatpush1.bf16.xpose.msra.mxu0 0
    %515 = vmatprep.subr.bf16.mxu0 0
    %516 = vmatpush1.bf16.xpose.msra.mxu0 0
    %517 = vmatprep.subr.bf16.mxu0 0
    %518 = vmatpush1.bf16.xpose.msra.mxu0 0
    %519 = vmatprep.subr.bf16.mxu0 0
    %520 = vmatpush1.bf16.xpose.msra.mxu0 0
    %521 = vmatprep.subr.bf16.mxu0 0
    %522 = vmatpush1.bf16.xpose.msra.mxu0 0
    %523 = vmatprep.subr.bf16.mxu0 0
    %524 = vmatpush1.bf16.xpose.msra.mxu0 0
    %525 = vmatprep.subr.bf16.mxu0 0
    %526 = vmatpush1.bf16.xpose.msra.mxu0 0
    %527 = vmatprep.subr.bf16.mxu0 0
    %528 = vmatpush1.bf16.xpose.msra.mxu0 0
    %529 = vmatprep.subr.bf16.mxu0 0
    %530 = vmatpush1.bf16.xpose.msra.mxu0 0
    %531 = vmatprep.subr.bf16.mxu0 0
    %532 = vmatpush1.bf16.xpose.msra.mxu0 0
    %533 = vmatprep.subr.bf16.mxu0 0
    %534 = vmatpush1.bf16.xpose.msra.mxu0 0
    %535 = vmatprep.subr.bf16.mxu0 0
    %536 = vmatpush1.bf16.xpose.msra.mxu0 0
    %537 = vmatprep.subr.bf16.mxu0 0
    %538 = vmatpush1.bf16.xpose.msra.mxu0 0
    %539 = vmatprep.subr.bf16.mxu0 0
    %540 = vmatpush1.bf16.xpose.msra.mxu0 0
    %541 = vmatprep.mubr.bf16.mxu0 0
    %542 = vmatmul.mubr.bf16.gmra.mrb[0].mxu0 %v504
    %v543 = vpop.f32.mrb[0].mxu0
    %v544 = vadd.f32 0.0, %v543
    %v545 = vpop.f32.mrb[0].mxu0
    %v546 = vpop.f32.mrb[0].mxu0
    %v547 = vpop.f32.mrb[0].mxu0
    %548 = vdwg.mxu0
    %v549 = vsel %vm171, %v544, -inf
    %550 = vmax.xlane.f32.xlu0 %v549
    %v551 = vpop.xlane.xlu0 %550
    %v552 = vsub.f32 %v544, %v551
    %v553 = vmul.f32 %v552, 1.442695
    %v554 = vpow.pop %v553
    %v555 = vsel %vm171, %v554, 0.0
    %556 = vadd.xlane.f32.xlu0 %v555
    %v557 = vpop.xlane.xlu0 %556
    %v558 = vrcp.pop %v557
    %v559 = vmul.f32 %v554, %v558
    %v560 = vpack.c.bf16 %v559, %v559
    %561 = vrot.lane.b32.xlu0 %v167, 40
    %v562 = vpop.permute.xlu0 %561
    %v564 = vsel %vm171, %v560, 0
    %v567 = vsel %vm235, %v562, 0
    %569 = vmatprep.subr.bf16.mxu0 0
    %570 = vmatpush1.bf16.msra.mxu0 %v567
    %571 = vmatprep.subr.bf16.mxu0 0
    %572 = vmatpush1.bf16.msra.mxu0 0
    %573 = vmatprep.subr.bf16.mxu0 0
    %574 = vmatpush1.bf16.msra.mxu0 0
    %575 = vmatprep.subr.bf16.mxu0 0
    %576 = vmatpush1.bf16.msra.mxu0 0
    %577 = vmatprep.subr.bf16.mxu0 0
    %578 = vmatpush1.bf16.msra.mxu0 0
    %579 = vmatprep.subr.bf16.mxu0 0
    %580 = vmatpush1.bf16.msra.mxu0 0
    %581 = vmatprep.subr.bf16.mxu0 0
    %582 = vmatpush1.bf16.msra.mxu0 0
    %583 = vmatprep.subr.bf16.mxu0 0
    %584 = vmatpush1.bf16.msra.mxu0 0
    %585 = vmatprep.subr.bf16.mxu0 0
    %586 = vmatpush1.bf16.msra.mxu0 0
    %587 = vmatprep.subr.bf16.mxu0 0
    %588 = vmatpush1.bf16.msra.mxu0 0
    %589 = vmatprep.subr.bf16.mxu0 0
    %590 = vmatpush1.bf16.msra.mxu0 0
    %591 = vmatprep.subr.bf16.mxu0 0
    %592 = vmatpush1.bf16.msra.mxu0 0
    %593 = vmatprep.subr.bf16.mxu0 0
    %594 = vmatpush1.bf16.msra.mxu0 0
    %595 = vmatprep.subr.bf16.mxu0 0
    %596 = vmatpush1.bf16.msra.mxu0 0
    %597 = vmatprep.subr.bf16.mxu0 0
    %598 = vmatpush1.bf16.msra.mxu0 0
    %599 = vmatprep.subr.bf16.mxu0 0
    %600 = vmatpush1.bf16.msra.mxu0 0
    %601 = vmatprep.mubr.bf16.mxu0 0
    %602 = vmatmul.mubr.bf16.gmra.mrb[0].mxu0 %v564
    %v603 = vpop.f32.mrb[0].mxu0
    %v604 = vadd.f32 0.0, %v603
    %v605 = vpop.f32.mrb[0].mxu0
    %v606 = vpop.f32.mrb[0].mxu0
    %v607 = vpop.f32.mrb[0].mxu0
    %608 = vdwg.mxu0
    %610 = vrot.lane.b32.xlu0 %v384, 8
    %v611 = vpop.permute.xlu0 %610
    %614 = vrot.lane.b32.xlu0 %v494, 16
    %v615 = vpop.permute.xlu0 %614
    %618 = vrot.lane.b32.xlu0 %v604, 24
    %v619 = vpop.permute.xlu0 %618
    %v621 = vsel %vm171, %v274, %v611
    %vm622 = vcmask 130048
    %v623 = vsel %vm622, %v621, %v615
    %vm624 = vcmask 195584
    %v625 = vsel %vm624, %v623, %v619
    %v626 = vpack.c.bf16 %v164, %v164
    %628 = vrot.lane.b32.xlu0 %v626, 96
    %v629 = vpop.permute.xlu0 %628
    %v631 = vsel %vm171, %v626, 0
    %v634 = vsel %vm171, %v629, 0
    %636 = vmatprep.subr.bf16.mxu0 0
    %637 = vmatpush1.bf16.xpose.msra.mxu0 %v634
    %638 = vmatprep.subr.bf16.mxu0 0
    %639 = vmatpush1.bf16.xpose.msra.mxu0 0
    %640 = vmatprep.subr.bf16.mxu0 0
    %641 = vmatpush1.bf16.xpose.msra.mxu0 0
    %642 = vmatprep.subr.bf16.mxu0 0
    %643 = vmatpush1.bf16.xpose.msra.mxu0 0
    %644 = vmatprep.subr.bf16.mxu0 0
    %645 = vmatpush1.bf16.xpose.msra.mxu0 0
    %646 = vmatprep.subr.bf16.mxu0 0
    %647 = vmatpush1.bf16.xpose.msra.mxu0 0
    %648 = vmatprep.subr.bf16.mxu0 0
    %649 = vmatpush1.bf16.xpose.msra.mxu0 0
    %650 = vmatprep.subr.bf16.mxu0 0
    %651 = vmatpush1.bf16.xpose.msra.mxu0 0
    %652 = vmatprep.subr.bf16.mxu0 0
    %653 = vmatpush1.bf16.xpose.msra.mxu0 0
    %654 = vmatprep.subr.bf16.mxu0 0
    %655 = vmatpush1.bf16.xpose.msra.mxu0 0
    %656 = vmatprep.subr.bf16.mxu0 0
    %657 = vmatpush1.bf16.xpose.msra.mxu0 0
    %658 = vmatprep.subr.bf16.mxu0 0
    %659 = vmatpush1.bf16.xpose.msra.mxu0 0
    %660 = vmatprep.subr.bf16.mxu0 0
    %661 = vmatpush1.bf16.xpose.msra.mxu0 0
    %662 = vmatprep.subr.bf16.mxu0 0
    %663 = vmatpush1.bf16.xpose.msra.mxu0 0
    %664 = vmatprep.subr.bf16.mxu0 0
    %665 = vmatpush1.bf16.xpose.msra.mxu0 0
    %666 = vmatprep.subr.bf16.mxu0 0
    %667 = vmatpush1.bf16.xpose.msra.mxu0 0
    %668 = vmatprep.mubr.bf16.mxu0 0
    %669 = vmatmul.mubr.bf16.gmra.mrb[0].mxu0 %v631
    %v670 = vpop.f32.mrb[0].mxu0
    %v671 = vadd.f32 0.0, %v670
    %v672 = vpop.f32.mrb[0].mxu0
    %v673 = vpop.f32.mrb[0].mxu0
    %v674 = vpop.f32.mrb[0].mxu0
    %675 = vdwg.mxu0
    %v676 = vsel %vm171, %v671, -inf
    %677 = vmax.xlane.f32.xlu0 %v676
    %v678 = vpop.xlane.xlu0 %677
    %v679 = vsub.f32 %v671, %v678
    %v680 = vmul.f32 %v679, 1.442695
    %v681 = vpow.pop %v680
    %v682 = vsel %vm171, %v681, 0.0
    %683 = vadd.xlane.f32.xlu0 %v682
    %v684 = vpop.xlane.xlu0 %683
    %v685 = vrcp.pop %v684
    %v686 = vmul.f32 %v681, %v685
    %v687 = vpack.c.bf16 %v686, %v686
    %688 = vrot.lane.b32.xlu0 %v626, 64
    %v689 = vpop.permute.xlu0 %688
    %v691 = vsel %vm171, %v687, 0
    %v694 = vsel %vm235, %v689, 0
    %696 = vmatprep.subr.bf16.mxu0 0
    %697 = vmatpush1.bf16.msra.mxu0 %v694
    %698 = vmatprep.subr.bf16.mxu0 0
    %699 = vmatpush1.bf16.msra.mxu0 0
    %700 = vmatprep.subr.bf16.mxu0 0
    %701 = vmatpush1.bf16.msra.mxu0 0
    %702 = vmatprep.subr.bf16.mxu0 0
    %703 = vmatpush1.bf16.msra.mxu0 0
    %704 = vmatprep.subr.bf16.mxu0 0
    %705 = vmatpush1.bf16.msra.mxu0 0
    %706 = vmatprep.subr.bf16.mxu0 0
    %707 = vmatpush1.bf16.msra.mxu0 0
    %708 = vmatprep.subr.bf16.mxu0 0
    %709 = vmatpush1.bf16.msra.mxu0 0
    %710 = vmatprep.subr.bf16.mxu0 0
    %711 = vmatpush1.bf16.msra.mxu0 0
    %712 = vmatprep.subr.bf16.mxu0 0
    %713 = vmatpush1.bf16.msra.mxu0 0
    %714 = vmatprep.subr.bf16.mxu0 0
    %715 = vmatpush1.bf16.msra.mxu0 0
    %716 = vmatprep.subr.bf16.mxu0 0
    %717 = vmatpush1.bf16.msra.mxu0 0
    %718 = vmatprep.subr.bf16.mxu0 0
    %719 = vmatpush1.bf16.msra.mxu0 0
    %720 = vmatprep.subr.bf16.mxu0 0
    %721 = vmatpush1.bf16.msra.mxu0 0
    %722 = vmatprep.subr.bf16.mxu0 0
    %723 = vmatpush1.bf16.msra.mxu0 0
    %724 = vmatprep.subr.bf16.mxu0 0
    %725 = vmatpush1.bf16.msra.mxu0 0
    %726 = vmatprep.subr.bf16.mxu0 0
    %727 = vmatpush1.bf16.msra.mxu0 0
    %728 = vmatprep.mubr.bf16.mxu0 0
    %729 = vmatmul.mubr.bf16.gmra.mrb[0].mxu0 %v691
    %v730 = vpop.f32.mrb[0].mxu0
    %v731 = vadd.f32 0.0, %v730
    %v732 = vpop.f32.mrb[0].mxu0
    %v733 = vpop.f32.mrb[0].mxu0
    %v734 = vpop.f32.mrb[0].mxu0
    %735 = vdwg.mxu0
    %736 = vrot.lane.b32.xlu0 %v626, 120
    %v737 = vpop.permute.xlu0 %736
    %738 = vrot.lane.b32.xlu0 %v626, 88
    %v739 = vpop.permute.xlu0 %738
    %v741 = vsel %vm171, %v737, 0
    %v744 = vsel %vm171, %v739, 0
    %746 = vmatprep.subr.bf16.mxu0 0
    %747 = vmatpush1.bf16.xpose.msra.mxu0 %v744
    %748 = vmatprep.subr.bf16.mxu0 0
    %749 = vmatpush1.bf16.xpose.msra.mxu0 0
    %750 = vmatprep.subr.bf16.mxu0 0
    %751 = vmatpush1.bf16.xpose.msra.mxu0 0
    %752 = vmatprep.subr.bf16.mxu0 0
    %753 = vmatpush1.bf16.xpose.msra.mxu0 0
    %754 = vmatprep.subr.bf16.mxu0 0
    %755 = vmatpush1.bf16.xpose.msra.mxu0 0
    %756 = vmatprep.subr.bf16.mxu0 0
    %757 = vmatpush1.bf16.xpose.msra.mxu0 0
    %758 = vmatprep.subr.bf16.mxu0 0
    %759 = vmatpush1.bf16.xpose.msra.mxu0 0
    %760 = vmatprep.subr.bf16.mxu0 0
    %761 = vmatpush1.bf16.xpose.msra.mxu0 0
    %762 = vmatprep.subr.bf16.mxu0 0
    %763 = vmatpush1.bf16.xpose.msra.mxu0 0
    %764 = vmatprep.subr.bf16.mxu0 0
    %765 = vmatpush1.bf16.xpose.msra.mxu0 0
    %766 = vmatprep.subr.bf16.mxu0 0
    %767 = vmatpush1.bf16.xpose.msra.mxu0 0
    %768 = vmatprep.subr.bf16.mxu0 0
    %769 = vmatpush1.bf16.xpose.msra.mxu0 0
    %770 = vmatprep.subr.bf16.mxu0 0
    %771 = vmatpush1.bf16.xpose.msra.mxu0 0
    %772 = vmatprep.subr.bf16.mxu0 0
    %773 = vmatpush1.bf16.xpose.msra.mxu0 0
    %774 = vmatprep.subr.bf16.mxu0 0
    %775 = vmatpush1.bf16.xpose.msra.mxu0 0
    %776 = vmatprep.subr.bf16.mxu0 0
    %777 = vmatpush1.bf16.xpose.msra.mxu0 0
    %778 = vmatprep.mubr.bf16.mxu0 0
    %779 = vmatmul.mubr.bf16.gmra.mrb[0].mxu0 %v741
    %v780 = vpop.f32.mrb[0].mxu0
    %v781 = vadd.f32 0.0, %v780
    %v782 = vpop.f32.mrb[0].mxu0
    %v783 = vpop.f32.mrb[0].mxu0
    %v784 = vpop.f32.mrb[0].mxu0
    %785 = vdwg.mxu0
    %v786 = vsel %vm171, %v781, -inf
    %787 = vmax.xlane.f32.xlu0 %v786
    %v788 = vpop.xlane.xlu0 %787
    %v789 = vsub.f32 %v781, %v788
    %v790 = vmul.f32 %v789, 1.442695
    %v791 = vpow.pop %v790
    %v792 = vsel %vm171, %v791, 0.0
    %793 = vadd.xlane.f32.xlu0 %v792
    %v794 = vpop.xlane.xlu0 %793
    %v795 = vrcp.pop %v794
    %v796 = vmul.f32 %v791, %v795
    %v797 = vpack.c.bf16 %v796, %v796
    %798 = vrot.lane.b32.xlu0 %v626, 56
    %v799 = vpop.permute.xlu0 %798
    %v801 = vsel %vm171, %v797, 0
    %v804 = vsel %vm235, %v799, 0
    %806 = vmatprep.subr.bf16.mxu0 0
    %807 = vmatpush1.bf16.msra.mxu0 %v804
    %808 = vmatprep.subr.bf16.mxu0 0
    %809 = vmatpush1.bf16.msra.mxu0 0
    %810 = vmatprep.subr.bf16.mxu0 0
    %811 = vmatpush1.bf16.msra.mxu0 0
    %812 = vmatprep.subr.bf16.mxu0 0
    %813 = vmatpush1.bf16.msra.mxu0 0
    %814 = vmatprep.subr.bf16.mxu0 0
    %815 = vmatpush1.bf16.msra.mxu0 0
    %816 = vmatprep.subr.bf16.mxu0 0
    %817 = vmatpush1.bf16.msra.mxu0 0
    %818 = vmatprep.subr.bf16.mxu0 0
    %819 = vmatpush1.bf16.msra.mxu0 0
    %820 = vmatprep.subr.bf16.mxu0 0
    %821 = vmatpush1.bf16.msra.mxu0 0
    %822 = vmatprep.subr.bf16.mxu0 0
    %823 = vmatpush1.bf16.msra.mxu0 0
    %824 = vmatprep.subr.bf16.mxu0 0
    %825 = vmatpush1.bf16.msra.mxu0 0
    %826 = vmatprep.subr.bf16.mxu0 0
    %827 = vmatpush1.bf16.msra.mxu0 0
    %828 = vmatprep.subr.bf16.mxu0 0
    %829 = vmatpush1.bf16.msra.mxu0 0
    %830 = vmatprep.subr.bf16.mxu0 0
    %831 = vmatpush1.bf16.msra.mxu0 0
    %832 = vmatprep.subr.bf16.mxu0 0
    %833 = vmatpush1.bf16.msra.mxu0 0
    %834 = vmatprep.subr.bf16.mxu0 0
    %835 = vmatpush1.bf16.msra.mxu0 0
    %836 = vmatprep.subr.bf16.mxu0 0
    %837 = vmatpush1.bf16.msra.mxu0 0
    %838 = vmatprep.mubr.bf16.mxu0 0
    %839 = vmatmul.mubr.bf16.gmra.mrb[0].mxu0 %v801
    %v840 = vpop.f32.mrb[0].mxu0
    %v841 = vadd.f32 0.0, %v840
    %v842 = vpop.f32.mrb[0].mxu0
    %v843 = vpop.f32.mrb[0].mxu0
    %v844 = vpop.f32.mrb[0].mxu0
    %845 = vdwg.mxu0
    %846 = vrot.lane.b32.xlu0 %v626, 112
    %v847 = vpop.permute.xlu0 %846
    %848 = vrot.lane.b32.xlu0 %v626, 80
    %v849 = vpop.permute.xlu0 %848
    %v851 = vsel %vm171, %v847, 0
    %v854 = vsel %vm171, %v849, 0
    %856 = vmatprep.subr.bf16.mxu0 0
    %857 = vmatpush1.bf16.xpose.msra.mxu0 %v854
    %858 = vmatprep.subr.bf16.mxu0 0
    %859 = vmatpush1.bf16.xpose.msra.mxu0 0
    %860 = vmatprep.subr.bf16.mxu0 0
    %861 = vmatpush1.bf16.xpose.msra.mxu0 0
    %862 = vmatprep.subr.bf16.mxu0 0
    %863 = vmatpush1.bf16.xpose.msra.mxu0 0
    %864 = vmatprep.subr.bf16.mxu0 0
    %865 = vmatpush1.bf16.xpose.msra.mxu0 0
    %866 = vmatprep.subr.bf16.mxu0 0
    %867 = vmatpush1.bf16.xpose.msra.mxu0 0
    %868 = vmatprep.subr.bf16.mxu0 0
    %869 = vmatpush1.bf16.xpose.msra.mxu0 0
    %870 = vmatprep.subr.bf16.mxu0 0
    %871 = vmatpush1.bf16.xpose.msra.mxu0 0
    %872 = vmatprep.subr.bf16.mxu0 0
    %873 = vmatpush1.bf16.xpose.msra.mxu0 0
    %874 = vmatprep.subr.bf16.mxu0 0
    %875 = vmatpush1.bf16.xpose.msra.mxu0 0
    %876 = vmatprep.subr.bf16.mxu0 0
    %877 = vmatpush1.bf16.xpose.msra.mxu0 0
    %878 = vmatprep.subr.bf16.mxu0 0
    %879 = vmatpush1.bf16.xpose.msra.mxu0 0
    %880 = vmatprep.subr.bf16.mxu0 0
    %881 = vmatpush1.bf16.xpose.msra.mxu0 0
    %882 = vmatprep.subr.bf16.mxu0 0
    %883 = vmatpush1.bf16.xpose.msra.mxu0 0
    %884 = vmatprep.subr.bf16.mxu0 0
    %885 = vmatpush1.bf16.xpose.msra.mxu0 0
    %886 = vmatprep.subr.bf16.mxu0 0
    %887 = vmatpush1.bf16.xpose.msra.mxu0 0
    %888 = vmatprep.mubr.bf16.mxu0 0
    %889 = vmatmul.mubr.bf16.gmra.mrb[0].mxu0 %v851
    %v890 = vpop.f32.mrb[0].mxu0
    %v891 = vadd.f32 0.0, %v890
    %v892 = vpop.f32.mrb[0].mxu0
    %v893 = vpop.f32.mrb[0].mxu0
    %v894 = vpop.f32.mrb[0].mxu0
    %895 = vdwg.mxu0
    %v896 = vsel %vm171, %v891, -inf
    %897 = vmax.xlane.f32.xlu0 %v896
    %v898 = vpop.xlane.xlu0 %897
    %v899 = vsub.f32 %v891, %v898
    %v900 = vmul.f32 %v899, 1.442695
    %v901 = vpow.pop %v900
    %v902 = vsel %vm171, %v901, 0.0
    %903 = vadd.xlane.f32.xlu0 %v902
    %v904 = vpop.xlane.xlu0 %903
    %v905 = vrcp.pop %v904
    %v906 = vmul.f32 %v901, %v905
    %v907 = vpack.c.bf16 %v906, %v906
    %908 = vrot.lane.b32.xlu0 %v626, 48
    %v909 = vpop.permute.xlu0 %908
    %v911 = vsel %vm171, %v907, 0
    %v914 = vsel %vm235, %v909, 0
    %916 = vmatprep.subr.bf16.mxu0 0
    %917 = vmatpush1.bf16.msra.mxu0 %v914
    %918 = vmatprep.subr.bf16.mxu0 0
    %919 = vmatpush1.bf16.msra.mxu0 0
    %920 = vmatprep.subr.bf16.mxu0 0
    %921 = vmatpush1.bf16.msra.mxu0 0
    %922 = vmatprep.subr.bf16.mxu0 0
    %923 = vmatpush1.bf16.msra.mxu0 0
    %924 = vmatprep.subr.bf16.mxu0 0
    %925 = vmatpush1.bf16.msra.mxu0 0
    %926 = vmatprep.subr.bf16.mxu0 0
    %927 = vmatpush1.bf16.msra.mxu0 0
    %928 = vmatprep.subr.bf16.mxu0 0
    %929 = vmatpush1.bf16.msra.mxu0 0
    %930 = vmatprep.subr.bf16.mxu0 0
    %931 = vmatpush1.bf16.msra.mxu0 0
    %932 = vmatprep.subr.bf16.mxu0 0
    %933 = vmatpush1.bf16.msra.mxu0 0
    %934 = vmatprep.subr.bf16.mxu0 0
    %935 = vmatpush1.bf16.msra.mxu0 0
    %936 = vmatprep.subr.bf16.mxu0 0
    %937 = vmatpush1.bf16.msra.mxu0 0
    %938 = vmatprep.subr.bf16.mxu0 0
    %939 = vmatpush1.bf16.msra.mxu0 0
    %940 = vmatprep.subr.bf16.mxu0 0
    %941 = vmatpush1.bf16.msra.mxu0 0
    %942 = vmatprep.subr.bf16.mxu0 0
    %943 = vmatpush1.bf16.msra.mxu0 0
    %944 = vmatprep.subr.bf16.mxu0 0
    %945 = vmatpush1.bf16.msra.mxu0 0
    %946 = vmatprep.subr.bf16.mxu0 0
    %947 = vmatpush1.bf16.msra.mxu0 0
    %948 = vmatprep.mubr.bf16.mxu0 0
    %949 = vmatmul.mubr.bf16.gmra.mrb[0].mxu0 %v911
    %v950 = vpop.f32.mrb[0].mxu0
    %v951 = vadd.f32 0.0, %v950
    %v952 = vpop.f32.mrb[0].mxu0
    %v953 = vpop.f32.mrb[0].mxu0
    %v954 = vpop.f32.mrb[0].mxu0
    %955 = vdwg.mxu0
    %956 = vrot.lane.b32.xlu0 %v626, 104
    %v957 = vpop.permute.xlu0 %956
    %958 = vrot.lane.b32.xlu0 %v626, 72
    %v959 = vpop.permute.xlu0 %958
    %v961 = vsel %vm171, %v957, 0
    %v964 = vsel %vm171, %v959, 0
    %966 = vmatprep.subr.bf16.mxu0 0
    %967 = vmatpush1.bf16.xpose.msra.mxu0 %v964
    %968 = vmatprep.subr.bf16.mxu0 0
    %969 = vmatpush1.bf16.xpose.msra.mxu0 0
    %970 = vmatprep.subr.bf16.mxu0 0
    %971 = vmatpush1.bf16.xpose.msra.mxu0 0
    %972 = vmatprep.subr.bf16.mxu0 0
    %973 = vmatpush1.bf16.xpose.msra.mxu0 0
    %974 = vmatprep.subr.bf16.mxu0 0
    %975 = vmatpush1.bf16.xpose.msra.mxu0 0
    %976 = vmatprep.subr.bf16.mxu0 0
    %977 = vmatpush1.bf16.xpose.msra.mxu0 0
    %978 = vmatprep.subr.bf16.mxu0 0
    %979 = vmatpush1.bf16.xpose.msra.mxu0 0
    %980 = vmatprep.subr.bf16.mxu0 0
    %981 = vmatpush1.bf16.xpose.msra.mxu0 0
    %982 = vmatprep.subr.bf16.mxu0 0
    %983 = vmatpush1.bf16.xpose.msra.mxu0 0
    %984 = vmatprep.subr.bf16.mxu0 0
    %985 = vmatpush1.bf16.xpose.msra.mxu0 0
    %986 = vmatprep.subr.bf16.mxu0 0
    %987 = vmatpush1.bf16.xpose.msra.mxu0 0
    %988 = vmatprep.subr.bf16.mxu0 0
    %989 = vmatpush1.bf16.xpose.msra.mxu0 0
    %990 = vmatprep.subr.bf16.mxu0 0
    %991 = vmatpush1.bf16.xpose.msra.mxu0 0
    %992 = vmatprep.subr.bf16.mxu0 0
    %993 = vmatpush1.bf16.xpose.msra.mxu0 0
    %994 = vmatprep.subr.bf16.mxu0 0
    %995 = vmatpush1.bf16.xpose.msra.mxu0 0
    %996 = vmatprep.subr.bf16.mxu0 0
    %997 = vmatpush1.bf16.xpose.msra.mxu0 0
    %998 = vmatprep.mubr.bf16.mxu0 0
    %999 = vmatmul.mubr.bf16.gmra.mrb[0].mxu0 %v961
    %v1000 = vpop.f32.mrb[0].mxu0
    %v1001 = vadd.f32 0.0, %v1000
    %v1002 = vpop.f32.mrb[0].mxu0
    %v1003 = vpop.f32.mrb[0].mxu0
    %v1004 = vpop.f32.mrb[0].mxu0
    %1005 = vdwg.mxu0
    %v1006 = vsel %vm171, %v1001, -inf
    %1007 = vmax.xlane.f32.xlu0 %v1006
    %v1008 = vpop.xlane.xlu0 %1007
    %v1009 = vsub.f32 %v1001, %v1008
    %v1010 = vmul.f32 %v1009, 1.442695
    %v1011 = vpow.pop %v1010
    %v1012 = vsel %vm171, %v1011, 0.0
    %1013 = vadd.xlane.f32.xlu0 %v1012
    %v1014 = vpop.xlane.xlu0 %1013
    %v1015 = vrcp.pop %v1014
    %v1016 = vmul.f32 %v1011, %v1015
    %v1017 = vpack.c.bf16 %v1016, %v1016
    %1018 = vrot.lane.b32.xlu0 %v626, 40
    %v1019 = vpop.permute.xlu0 %1018
    %v1021 = vsel %vm171, %v1017, 0
    %v1024 = vsel %vm235, %v1019, 0
    %1026 = vmatprep.subr.bf16.mxu0 0
    %1027 = vmatpush1.bf16.msra.mxu0 %v1024
    %1028 = vmatprep.subr.bf16.mxu0 0
    %1029 = vmatpush1.bf16.msra.mxu0 0
    %1030 = vmatprep.subr.bf16.mxu0 0
    %1031 = vmatpush1.bf16.msra.mxu0 0
    %1032 = vmatprep.subr.bf16.mxu0 0
    %1033 = vmatpush1.bf16.msra.mxu0 0
    %1034 = vmatprep.subr.bf16.mxu0 0
    %1035 = vmatpush1.bf16.msra.mxu0 0
    %1036 = vmatprep.subr.bf16.mxu0 0
    %1037 = vmatpush1.bf16.msra.mxu0 0
    %1038 = vmatprep.subr.bf16.mxu0 0
    %1039 = vmatpush1.bf16.msra.mxu0 0
    %1040 = vmatprep.subr.bf16.mxu0 0
    %1041 = vmatpush1.bf16.msra.mxu0 0
    %1042 = vmatprep.subr.bf16.mxu0 0
    %1043 = vmatpush1.bf16.msra.mxu0 0
    %1044 = vmatprep.subr.bf16.mxu0 0
    %1045 = vmatpush1.bf16.msra.mxu0 0
    %1046 = vmatprep.subr.bf16.mxu0 0
    %1047 = vmatpush1.bf16.msra.mxu0 0
    %1048 = vmatprep.subr.bf16.mxu0 0
    %1049 = vmatpush1.bf16.msra.mxu0 0
    %1050 = vmatprep.subr.bf16.mxu0 0
    %1051 = vmatpush1.bf16.msra.mxu0 0
    %1052 = vmatprep.subr.bf16.mxu0 0
    %1053 = vmatpush1.bf16.msra.mxu0 0
    %1054 = vmatprep.subr.bf16.mxu0 0
    %1055 = vmatpush1.bf16.msra.mxu0 0
    %1056 = vmatprep.subr.bf16.mxu0 0
    %1057 = vmatpush1.bf16.msra.mxu0 0
    %1058 = vmatprep.mubr.bf16.mxu0 0
    %1059 = vmatmul.mubr.bf16.gmra.mrb[0].mxu0 %v1021
    %v1060 = vpop.f32.mrb[0].mxu0
    %v1061 = vadd.f32 0.0, %v1060
    %v1062 = vpop.f32.mrb[0].mxu0
    %v1063 = vpop.f32.mrb[0].mxu0
    %v1064 = vpop.f32.mrb[0].mxu0
    %1065 = vdwg.mxu0
    %1067 = vrot.lane.b32.xlu0 %v841, 8
    %v1068 = vpop.permute.xlu0 %1067
    %1071 = vrot.lane.b32.xlu0 %v951, 16
    %v1072 = vpop.permute.xlu0 %1071
    %1075 = vrot.lane.b32.xlu0 %v1061, 24
    %v1076 = vpop.permute.xlu0 %1075
    %v1078 = vsel %vm171, %v731, %v1068
    %v1079 = vsel %vm622, %v1078, %v1072
    %v1080 = vsel %vm624, %v1079, %v1076
    %v1081 = vpack.c.bf16 %v1080, %v625
    %v1082 = vld [vmem:[%s5] sm:$0xf]
    %v1083 = vld [vmem:[%s5 + $0x4] sm:$0xf]
    %v1084 = vld [vmem:[%s5 + $0x8] sm:$0xf]
    %v1085 = vld [vmem:[%s5 + $0xc] sm:$0xf]
    %v1087 = vlaneseq
    %v1088 = vshrl.u32 %v1087, 7
    %v1089 = vsub.s32 0, %v1088
    %v1090 = vrot.slane %v53, %v1089
    %v1096 = vunpack.c.l.b16 %v1082
    %v1097 = vunpack.c.l.b16 %v1083
    %v1098 = vunpack.c.l.b16 %v1084
    %v1099 = vunpack.c.l.b16 %v1085
    %v1100 = vpack.c.b16 %v1097, %v1096
    %v1101 = vpack.c.b16 %v1099, %v1098
    %v1105 = vsel %vm56, %v1081, 0
    %1107 = vmatprep.subr.bf16.mxu0 0
    %1108 = vmatpush1.bf16.msra.mxu0 %v1100
    %1109 = vmatprep.subr.bf16.mxu0 0
    %1110 = vmatpush1.bf16.msra.mxu0 %v1101
    %1111 = vmatprep.subr.bf16.mxu0 0
    %1112 = vmatpush1.bf16.msra.mxu0 0
    %1113 = vmatprep.subr.bf16.mxu0 0
    %1114 = vmatpush1.bf16.msra.mxu0 0
    %1115 = vmatprep.subr.bf16.mxu0 0
    %1116 = vmatpush1.bf16.msra.mxu0 0
    %1117 = vmatprep.subr.bf16.mxu0 0
    %1118 = vmatpush1.bf16.msra.mxu0 0
    %1119 = vmatprep.subr.bf16.mxu0 0
    %1120 = vmatpush1.bf16.msra.mxu0 0
    %1121 = vmatprep.subr.bf16.mxu0 0
    %1122 = vmatpush1.bf16.msra.mxu0 0
    %1123 = vmatprep.subr.bf16.mxu0 0
    %1124 = vmatpush1.bf16.msra.mxu0 0
    %1125 = vmatprep.subr.bf16.mxu0 0
    %1126 = vmatpush1.bf16.msra.mxu0 0
    %1127 = vmatprep.subr.bf16.mxu0 0
    %1128 = vmatpush1.bf16.msra.mxu0 0
    %1129 = vmatprep.subr.bf16.mxu0 0
    %1130 = vmatpush1.bf16.msra.mxu0 0
    %1131 = vmatprep.subr.bf16.mxu0 0
    %1132 = vmatpush1.bf16.msra.mxu0 0
    %1133 = vmatprep.subr.bf16.mxu0 0
    %1134 = vmatpush1.bf16.msra.mxu0 0
    %1135 = vmatprep.subr.bf16.mxu0 0
    %1136 = vmatpush1.bf16.msra.mxu0 0
    %1137 = vmatprep.subr.bf16.mxu0 0
    %1138 = vmatpush1.bf16.msra.mxu0 0
    %1139 = vmatprep.mubr.bf16.mxu0 0
    %1140 = vmatmul.mubr.bf16.gmra.mrb[0].mxu0 %v1105
    %v1141 = vpop.f32.mrb[0].mxu0
    %v1142 = vadd.f32 %v1090, %v1141
    %v1143 = vpop.f32.mrb[0].mxu0
    %v1144 = vpop.f32.mrb[0].mxu0
    %v1145 = vadd.f32 %v1090, %v1144
    %v1146 = vpop.f32.mrb[0].mxu0
    %1147 = vdwg.mxu0
    %v1148 = vadd.f32 %v46, %v1142
    %v1149 = vadd.f32 %v47, %v1145
    %v1150 = vsel %vm56, %v1148, 0.0
    %1151 = vadd.xlane.f32.xlu0 %v1150
    %v1152 = vpop.xlane.xlu0 %1151
    %v1153 = vsel %vm56, %v1149, 0.0
    %1154 = vadd.xlane.f32.xlu0 %v1153
    %v1155 = vpop.xlane.xlu0 %1154
    %v1156 = vmul.f32 %v1152, %v63
    %v1157 = vmul.f32 %v1155, %v63
    %v1158 = vsub.f32 %v1148, %v1156
    %v1159 = vsub.f32 %v1149, %v1157
    %v1160 = vmul.f32 %v1158, %v1158
    %v1161 = vmul.f32 %v1159, %v1159
    %v1162 = vsel %vm56, %v1160, 0.0
    %1163 = vadd.xlane.f32.xlu0 %v1162
    %v1164 = vpop.xlane.xlu0 %1163
    %v1165 = vsel %vm56, %v1161, 0.0
    %1166 = vadd.xlane.f32.xlu0 %v1165
    %v1167 = vpop.xlane.xlu0 %1166
    %v1168 = vmul.f32 %v1164, %v63
    %v1169 = vmul.f32 %v1167, %v63
    %v1170 = vadd.f32 %v1168, 1e-06
    %v1171 = vadd.f32 %v1169, 1e-06
    %v1172 = vrsqrt.pop %v1170
    %v1173 = vrsqrt.pop %v1171
    %v1174 = vmul.f32 %v1158, %v1172
    %v1175 = vmul.f32 %v1159, %v1173
    %v1177 = vlaneseq
    %v1178 = vshrl.u32 %v1177, 7
    %v1179 = vsub.s32 0, %v1178
    %v1180 = vrot.slane %v50, %v1179
    %v1182 = vmul.f32 %v1174, %v1180
    %v1183 = vmul.f32 %v1175, %v1180
    %v1185 = vlaneseq
    %v1186 = vshrl.u32 %v1185, 7
    %v1187 = vsub.s32 0, %v1186
    %v1188 = vrot.slane %v51, %v1187
    %v1190 = vadd.f32 %v1182, %v1188
    %v1191 = vadd.f32 %v1183, %v1188
    %v1192 = vpack.c.bf16 %v1191, %v1190
    %v1193 = vld [vmem:[%s9] sm:$0xf]
    %v1194 = vld [vmem:[%s9 + $0x4] sm:$0xf]
    %v1195 = vld [vmem:[%s9 + $0x8] sm:$0xf]
    %v1196 = vld [vmem:[%s9 + $0xc] sm:$0xf]
    %v1198 = vlaneseq
    %v1199 = vshrl.u32 %v1198, 7
    %v1200 = vsub.s32 0, %v1199
    %v1201 = vrot.slane %v54, %v1200
    %v1207 = vunpack.c.l.b16 %v1193
    %v1208 = vunpack.c.l.b16 %v1194
    %v1209 = vunpack.c.l.b16 %v1195
    %v1210 = vunpack.c.l.b16 %v1196
    %v1211 = vpack.c.b16 %v1208, %v1207
    %v1212 = vpack.c.b16 %v1210, %v1209
    %v1216 = vsel %vm56, %v1192, 0
    %1218 = vmatprep.subr.bf16.mxu0 0
    %1219 = vmatpush1.bf16.msra.mxu0 %v1211
    %1220 = vmatprep.subr.bf16.mxu0 0
    %1221 = vmatpush1.bf16.msra.mxu0 %v1212
    %1222 = vmatprep.subr.bf16.mxu0 0
    %1223 = vmatpush1.bf16.msra.mxu0 0
    %1224 = vmatprep.subr.bf16.mxu0 0
    %1225 = vmatpush1.bf16.msra.mxu0 0
    %1226 = vmatprep.subr.bf16.mxu0 0
    %1227 = vmatpush1.bf16.msra.mxu0 0
    %1228 = vmatprep.subr.bf16.mxu0 0
    %1229 = vmatpush1.bf16.msra.mxu0 0
    %1230 = vmatprep.subr.bf16.mxu0 0
    %1231 = vmatpush1.bf16.msra.mxu0 0
    %1232 = vmatprep.subr.bf16.mxu0 0
    %1233 = vmatpush1.bf16.msra.mxu0 0
    %1234 = vmatprep.subr.bf16.mxu0 0
    %1235 = vmatpush1.bf16.msra.mxu0 0
    %1236 = vmatprep.subr.bf16.mxu0 0
    %1237 = vmatpush1.bf16.msra.mxu0 0
    %1238 = vmatprep.subr.bf16.mxu0 0
    %1239 = vmatpush1.bf16.msra.mxu0 0
    %1240 = vmatprep.subr.bf16.mxu0 0
    %1241 = vmatpush1.bf16.msra.mxu0 0
    %1242 = vmatprep.subr.bf16.mxu0 0
    %1243 = vmatpush1.bf16.msra.mxu0 0
    %1244 = vmatprep.subr.bf16.mxu0 0
    %1245 = vmatpush1.bf16.msra.mxu0 0
    %1246 = vmatprep.subr.bf16.mxu0 0
    %1247 = vmatpush1.bf16.msra.mxu0 0
    %1248 = vmatprep.subr.bf16.mxu0 0
    %1249 = vmatpush1.bf16.msra.mxu0 0
    %1250 = vmatprep.mubr.bf16.mxu0 0
    %1251 = vmatmul.mubr.bf16.gmra.mrb[0].mxu0 %v1216
    %v1252 = vpop.f32.mrb[0].mxu0
    %v1253 = vadd.f32 %v1201, %v1252
    %v1254 = vpop.f32.mrb[0].mxu0
    %v1255 = vpop.f32.mrb[0].mxu0
    %v1256 = vadd.f32 %v1201, %v1255
    %v1257 = vpop.f32.mrb[0].mxu0
    %1258 = vdwg.mxu0
    %v1259 = vmul.f32 %v1253, 1.702
    %v1260 = vmul.f32 %v1256, 1.702
    %v1261 = vxor.u32 %v1259, 2147483648
    %v1262 = vxor.u32 %v1260, 2147483648
    %v1263 = vmul.f32 %v1261, 1.442695
    %v1264 = vpow.pop %v1263
    %v1265 = vmul.f32 %v1262, 1.442695
    %v1266 = vpow.pop %v1265
    %v1267 = vadd.f32 %v1264, 1.0
    %v1268 = vadd.f32 %v1266, 1.0
    %v1269 = vrcp.pop %v1267
    %v1270 = vmul.f32 1.0, %v1269
    %v1271 = vrcp.pop %v1268
    %v1272 = vmul.f32 1.0, %v1271
    %v1273 = vmul.f32 %v1253, %v1270
    %v1274 = vmul.f32 %v1256, %v1272
    %v1275 = vpack.c.bf16 %v1274, %v1273
    %v1276 = vld [vmem:[%s11] sm:$0xf]
    %v1277 = vld [vmem:[%s11 + $0x4] sm:$0xf]
    %v1278 = vld [vmem:[%s11 + $0x8] sm:$0xf]
    %v1279 = vld [vmem:[%s11 + $0xc] sm:$0xf]
    %v1280 = vld [vmem:[%s11 + $0x10] sm:$0xf]
    %v1281 = vld [vmem:[%s11 + $0x14] sm:$0xf]
    %v1282 = vld [vmem:[%s11 + $0x18] sm:$0xf]
    %v1283 = vld [vmem:[%s11 + $0x1c] sm:$0xf]
    %v1284 = vld [vmem:[%s11 + $0x20] sm:$0xf]
    %v1285 = vld [vmem:[%s11 + $0x24] sm:$0xf]
    %v1286 = vld [vmem:[%s11 + $0x28] sm:$0xf]
    %v1287 = vld [vmem:[%s11 + $0x2c] sm:$0xf]
    %v1288 = vld [vmem:[%s11 + $0x30] sm:$0xf]
    %v1289 = vld [vmem:[%s11 + $0x34] sm:$0xf]
    %v1290 = vld [vmem:[%s11 + $0x38] sm:$0xf]
    %v1291 = vld [vmem:[%s11 + $0x3c] sm:$0xf]
    %v1293 = vlaneseq
    %v1294 = vshrl.u32 %v1293, 7
    %v1295 = vsub.s32 0, %v1294
    %v1296 = vrot.slane %v55, %v1295
    %v1314 = vunpack.c.l.b16 %v1276
    %v1315 = vunpack.c.l.b16 %v1277
    %v1316 = vunpack.c.l.b16 %v1278
    %v1317 = vunpack.c.l.b16 %v1279
    %v1318 = vunpack.c.l.b16 %v1280
    %v1319 = vunpack.c.l.b16 %v1281
    %v1320 = vunpack.c.l.b16 %v1282
    %v1321 = vunpack.c.l.b16 %v1283
    %v1322 = vunpack.c.l.b16 %v1284
    %v1323 = vunpack.c.l.b16 %v1285
    %v1324 = vunpack.c.l.b16 %v1286
    %v1325 = vunpack.c.l.b16 %v1287
    %v1326 = vunpack.c.l.b16 %v1288
    %v1327 = vunpack.c.l.b16 %v1289
    %v1328 = vunpack.c.l.b16 %v1290
    %v1329 = vunpack.c.l.b16 %v1291
    %v1330 = vpack.c.b16 %v1315, %v1314
    %v1331 = vpack.c.b16 %v1317, %v1316
    %v1332 = vpack.c.b16 %v1319, %v1318
    %v1333 = vpack.c.b16 %v1321, %v1320
    %v1334 = vpack.c.b16 %v1323, %v1322
    %v1335 = vpack.c.b16 %v1325, %v1324
    %v1336 = vpack.c.b16 %v1327, %v1326
    %v1337 = vpack.c.b16 %v1329, %v1328
    %1346 = vmatprep.subr.bf16.mxu0 0
    %1347 = vmatpush1.bf16.msra.mxu0 %v1330
    %1348 = vmatprep.subr.bf16.mxu0 0
    %1349 = vmatpush1.bf16.msra.mxu0 %v1331
    %1350 = vmatprep.subr.bf16.mxu0 0
    %1351 = vmatpush1.bf16.msra.mxu0 %v1332
    %1352 = vmatprep.subr.bf16.mxu0 0
    %1353 = vmatpush1.bf16.msra.mxu0 %v1333
    %1354 = vmatprep.subr.bf16.mxu0 0
    %1355 = vmatpush1.bf16.msra.mxu0 %v1334
    %1356 = vmatprep.subr.bf16.mxu0 0
    %1357 = vmatpush1.bf16.msra.mxu0 %v1335
    %1358 = vmatprep.subr.bf16.mxu0 0
    %1359 = vmatpush1.bf16.msra.mxu0 %v1336
    %1360 = vmatprep.subr.bf16.mxu0 0
    %1361 = vmatpush1.bf16.msra.mxu0 %v1337
    %1362 = vmatprep.subr.bf16.mxu0 0
    %1363 = vmatpush1.bf16.msra.mxu0 0
    %1364 = vmatprep.subr.bf16.mxu0 0
    %1365 = vmatpush1.bf16.msra.mxu0 0
    %1366 = vmatprep.subr.bf16.mxu0 0
    %1367 = vmatpush1.bf16.msra.mxu0 0
    %1368 = vmatprep.subr.bf16.mxu0 0
    %1369 = vmatpush1.bf16.msra.mxu0 0
    %1370 = vmatprep.subr.bf16.mxu0 0
    %1371 = vmatpush1.bf16.msra.mxu0 0
    %1372 = vmatprep.subr.bf16.mxu0 0
    %1373 = vmatpush1.bf16.msra.mxu0 0
    %1374 = vmatprep.subr.bf16.mxu0 0
    %1375 = vmatpush1.bf16.msra.mxu0 0
    %1376 = vmatprep.subr.bf16.mxu0 0
    %1377 = vmatpush1.bf16.msra.mxu0 0
    %1378 = vmatprep.mubr.bf16.mxu0 0
    %1379 = vmatmul.mubr.bf16.gmra.mrb[0].mxu0 %v1275
    %v1380 = vpop.f32.mrb[0].mxu0
    %v1381 = vadd.f32 %v1296, %v1380
    %v1382 = vpop.f32.mrb[0].mxu0
    %v1383 = vpop.f32.mrb[0].mxu0
    %v1384 = vadd.f32 %v1296, %v1383
    %v1385 = vpop.f32.mrb[0].mxu0
    %1386 = vdwg.mxu0
    %v1387 = vadd.f32 %v1148, %v1381
    %v1388 = vadd.f32 %v1149, %v1384
    %1389 = vst.msk [vmem:[#allocation2] sm:$0xff] %vm56, %v1387
    %1390 = vst.msk [vmem:[#allocation2 + $0x8] sm:$0xff] %vm56, %v1388
    // Predicated region
    $region54: #{vit_layer.1} parent=1 // pred_check
      _
    $region55: #{vit_layer.1} parent=1 // pred_check_branch
      %1392 = sbr.rel (0) target = $region57
    $region56: #{vit_layer.1} parent=1 // pred_region
      %s1394 = ssub.s32 256, 256
      %1395 = vsyncadd [#allocation3], %s1394
      %s1396 = sshll.u32 [#allocation2], 4
      %s1397 = int_to_ptr.vmem [resolvable:$true] %s1396
      %1402 = dma.vmem_to_hbm [thread:$0]  %s1397, 256, %s13, [#allocation3], 128, 128, 8
    $region57: #{vit_layer.1} parent=1 // pred_fallthru
      _
    // Predicated region
    $region58: #{vit_layer.1} parent=1 // pred_check
      _
    $region59: #{vit_layer.1} parent=1 // pred_check_branch
      %1404 = sbr.rel (0) target = $region61
    $region60: #{vit_layer.1} parent=1 // pred_region
      %1405 = dma.done [#allocation3], 256
    $region61: #{vit_layer.1} parent=1 // pred_fallthru
      _
    %1406 = vsyncpa [#allocation3], 1

</llo_original>
